<compile_context>
chip_gen: v7x
topology: tpu7x:2x2x1
jax: 0.10.0
libtpu: 0.0.40
codegen_flags: <defaults>
</compile_context>

<pallas_src>
import functools
import math

import jax
import jax.numpy as jnp
import numpy as np
from jax.experimental import pallas as pl
from jax.experimental.pallas import tpu as pltpu


def attention_module_kernel(sc_ref, x_ref, wvcol_ref, bvcol_ref,
                            w1t_ref, b1col_ref, w2t_ref, b2col_ref,
                            wfcol_ref, gvbw_ref, out_ref, *, num_heads):
    # x block: (S, TB) -- batch tile lives on the lane axis (lane dense).
    x = x_ref[...]
    x_t = x[:, None, :]            # (T, 1, TB)  key/value position t
    x_q = x[None, :, :]            # (1, S, TB)  query position s
    xx = x_t * x_q                 # (T, S, TB)  x[t]*x[s] (hoisted out of head loop)

    xa_list = []                   # per-head attn @ x, shape (S, TB)
    xam_list = []                  # per-head mean over s,   shape (1, TB)
    for h in range(num_heads):
        a = sc_ref[h, 0]
        b = sc_ref[h, 1]
        c = sc_ref[h, 2]
        d = sc_ref[h, 3]
        # rank-1 QK^T (scale already folded into a,b,c,d):
        #   scores[t, s, b] = a*x[s]x[t] + b*x[s] + c*x[t] + d
        scores = a * xx + b * x_q + c * x_t + d              # (T, S, TB)
        m = jnp.max(scores, axis=0, keepdims=True)           # (1, S, TB)
        p = jnp.exp(scores - m)                              # (T, S, TB)
        den = jnp.sum(p, axis=0)                             # (S, TB)
        num = jnp.sum(p * x_t, axis=0)                       # (S, TB)
        xa = num * pl.reciprocal(den, approx=True)           # softmax(scores) @ x
        xa_list.append(xa)
        xam_list.append(jnp.mean(xa, axis=0, keepdims=True))

    # Squeeze:  sq[c, b] = wv[c] * xam[head(c), b] + bv[c]        -> (HD, TB)
    sq = bvcol_ref[...]                                      # (HD, 1)
    for h in range(num_heads):
        sq = sq + wvcol_ref[h] * xam_list[h]                 # (HD,1)*(1,TB)

    # Excitation MLP (batch on lanes): z = W1 sq + b1 ; e = sigmoid(W2 z + b2)
    z = jnp.dot(w1t_ref[...], sq, preferred_element_type=jnp.float32) + b1col_ref[...]
    e = jax.nn.sigmoid(
        jnp.dot(w2t_ref[...], z, preferred_element_type=jnp.float32) + b2col_ref[...])

    # Fold final fc through the SE gate:
    #   out[s,b] = sum_h xa_h[s,b]*gv[h,b] + gb[b] + bf
    #   gv[h,b]  = sum_{c in head h} wv[c]*e[c,b]*wf[c]
    #   gb[b]    = sum_c bv[c]*e[c,b]*wf[c]
    g = e * wfcol_ref[...]                                   # (HD, TB)
    gvb = jnp.dot(gvbw_ref[...], g, preferred_element_type=jnp.float32)  # (8, TB)

    bf = sc_ref[num_heads, 0]
    out = gvb[num_heads:num_heads + 1, :] + bf               # (1, TB)
    for h in range(num_heads):
        out = out + xa_list[h] * gvb[h:h + 1, :]             # (S, TB)
    out_ref[...] = out.astype(out_ref.dtype)


def attention_module_forward(x, params, *, num_heads, hidden_dim, batch_tile=512):
    B, S, C = x.shape
    assert C == 1, "forward only well-defined for num_cities == input_dim == 1"
    H, hd = num_heads, hidden_dim
    HD = H * hd
    HD2 = HD // 2
    f32 = jnp.float32

    # ---- one-time weight folding (tiny, wrapper-side; sanctioned layout/algebra) ----
    wq = params['wq'].reshape(H, hd)
    bq = params['bq'].reshape(H, hd)
    wk = params['wk'].reshape(H, hd)
    bk = params['bk'].reshape(H, hd)
    scale = 1.0 / math.sqrt(hd)
    coef = jnp.stack([jnp.sum(wq * wk, -1), jnp.sum(wq * bk, -1),
                      jnp.sum(bq * wk, -1), jnp.sum(bq * bk, -1)], axis=1) * scale
    bf_row = jnp.concatenate([params['bf'].reshape(1, 1),
                              jnp.zeros((1, 3), f32)], axis=1)
    scalars = jnp.concatenate([coef.astype(f32), bf_row], axis=0)     # (H+1, 4) -> SMEM

    wv = params['wv'].reshape(HD)
    bv = params['bv'].reshape(HD)
    head_of = jnp.repeat(jnp.arange(H), hd)                           # (HD,)
    mask = (head_of[None, :] == jnp.arange(H)[:, None]).astype(f32)   # (H, HD)
    wv_rows = mask * wv[None, :]                                      # (H, HD) per-head masked wv
    wv_cols = wv_rows[:, :, None]                                     # (H, HD, 1)
    n_rows = ((H + 1 + 7) // 8) * 8                                   # pad matmul M to 8
    gvb_w = jnp.concatenate(
        [wv_rows, bv[None, :], jnp.zeros((n_rows - H - 1, HD), f32)], axis=0)

    bv_col = bv[:, None]                                              # (HD, 1)
    w1t = params['w1'].T                                              # (HD2, HD)
    b1_col = params['b1'].reshape(HD2, 1)
    w2t = params['w2'].T                                              # (HD, HD2)
    b2_col = params['b2'].reshape(HD, 1)
    wf_col = params['wf'].reshape(HD, 1)

    # ---- lane-dense batch layout: batch goes on the lane (last) axis ----
    x_t = x[..., 0].T                                                 # (S, B)
    if B <= batch_tile:
        TB, Bp = B, B                                                 # single tile = full dims
    else:
        TB = batch_tile                                               # multiple of 128
        Bp = ((B + TB - 1) // TB) * TB
        x_t = jnp.pad(x_t, ((0, 0), (0, Bp - B)))
    grid = (Bp // TB,)

    kernel = functools.partial(attention_module_kernel, num_heads=H)

    def const(arr):
        zeros = (0,) * arr.ndim
        return pl.BlockSpec(arr.shape, lambda i: zeros)               # resident weights

    out_t = pl.pallas_call(
        kernel,
        out_shape=jax.ShapeDtypeStruct((S, Bp), f32),
        grid_spec=pltpu.PrefetchScalarGridSpec(
            num_scalar_prefetch=0,
            grid=grid,
            in_specs=[
                pl.BlockSpec(memory_space=pltpu.MemorySpace.SMEM),    # per-head scalars + bf
                pl.BlockSpec((S, TB), lambda i: (0, i)),              # x, batch on lanes
                const(wv_cols), const(bv_col),
                const(w1t), const(b1_col),
                const(w2t), const(b2_col),
                const(wf_col), const(gvb_w),
            ],
            out_specs=pl.BlockSpec((S, TB), lambda i: (0, i)),        # lane-dense output
        ),
        compiler_params=pltpu.CompilerParams(
            dimension_semantics=("parallel",),
            vmem_limit_bytes=32 * 1024 * 1024),
    )(scalars, x_t, wv_cols, bv_col, w1t, b1_col, w2t, b2_col, wf_col, gvb_w)

    out = out_t[:, :B].T                                              # (B, S)
    # PyTorch output shape: (batch, seq, num_cities, input_dim)
    return out.reshape(B, S, 1, 1)


def reference_forward(x, params, *, num_heads, hidden_dim):
    """Pure-JAX reference mirroring the PyTorch forward (num_cities == 1)."""
    B, S, _ = x.shape
    HD = num_heads * hidden_dim
    q = jnp.einsum('bsc,ch->bsh', x, params['wq']) + params['bq'][0]
    k = jnp.einsum('bsc,ch->bsh', x, params['wk']) + params['bk'][0]
    v = jnp.einsum('bsc,ch->bsh', x, params['wv']) + params['bv'][0]
    q = q.reshape(B, S, num_heads, hidden_dim)
    k = k.reshape(B, S, num_heads, hidden_dim)
    v = v.reshape(B, S, num_heads, hidden_dim)
    energy = jnp.einsum('bqhd,bkhd->bhqk', q, k) / math.sqrt(hidden_dim)
    attn = jax.nn.softmax(energy, axis=-1)
    to = jnp.einsum('bhqk,bkhd->bqhd', attn, v).reshape(B, S, HD)
    sq = jnp.mean(to, axis=1)
    z = sq @ params['w1'] + params['b1'][0]
    e = jax.nn.sigmoid(z @ params['w2'] + params['b2'][0])
    so = to * e[:, None, :]
    out = so @ params['wf'] + params['bf'][0]
    return out.reshape(B, S, 1, 1)


if __name__ == "__main__":
    # small shapes consistent with the module: input_dim = num_cities = 1
    batch = 2
    seq_len = 8
    hidden_dim = 32
    num_heads = 4
    HD = hidden_dim * num_heads
    HD2 = HD // 2

    key = jax.random.PRNGKey(0)
    keys = jax.random.split(key, 13)

    def init(k, shape, scale=0.1):
        return jax.random.normal(k, shape, dtype=jnp.float32) * scale

    params = dict(
        wq=init(keys[0], (1, HD)),   bq=init(keys[1], (1, HD)),
        wk=init(keys[2], (1, HD)),   bk=init(keys[3], (1, HD)),
        wv=init(keys[4], (1, HD)),   bv=init(keys[5], (1, HD)),
        w1=init(keys[6], (HD, HD2)), b1=init(keys[7], (1, HD2)),
        w2=init(keys[8], (HD2, HD)), b2=init(keys[9], (1, HD)),
        wf=init(keys[10], (HD, 1)),  bf=init(keys[11], (1, 1)),
    )
    x = jax.random.normal(keys[12], (batch, seq_len, 1), dtype=jnp.float32)

    out = attention_module_forward(x, params,
                                   num_heads=num_heads, hidden_dim=hidden_dim)
    out = jax.block_until_ready(out)
    assert out.shape == (batch, seq_len, 1, 1)

    ref = reference_forward(x, params, num_heads=num_heads, hidden_dim=hidden_dim)
    np.testing.assert_allclose(np.asarray(out), np.asarray(ref),
                               rtol=1e-2, atol=1e-3)
    print("KERNEL_OK")
</pallas_src>

<mosaic_0001>
module attributes {stable_mosaic.version = 11 : i64} {
  func.func @attention_module_kernel(%arg0: i32, %arg1: memref<5x4xf32, #tpu.memory_space<smem>>, %arg2: memref<8x2xf32, #tpu.memory_space<vmem>>, %arg3: memref<4x128x1xf32, #tpu.memory_space<vmem>>, %arg4: memref<128x1xf32, #tpu.memory_space<vmem>>, %arg5: memref<64x128xf32, #tpu.memory_space<vmem>>, %arg6: memref<64x1xf32, #tpu.memory_space<vmem>>, %arg7: memref<128x64xf32, #tpu.memory_space<vmem>>, %arg8: memref<128x1xf32, #tpu.memory_space<vmem>>, %arg9: memref<128x1xf32, #tpu.memory_space<vmem>>, %arg10: memref<8x128xf32, #tpu.memory_space<vmem>>, %arg11: memref<8x2xf32, #tpu.memory_space<vmem>>) attributes {dimension_semantics = [#tpu.dimension_semantics<parallel>], iteration_bounds = array<i64: 1>, scalar_prefetch = 0 : i64, scratch_operands = 0 : i64, tpu.core_type = #tpu.core_type<tc>, window_params = [{transform_indices = @transform_0, window_bounds = array<i64: 5, 4>}, {transform_indices = @transform_1, window_bounds = array<i64: 8, 2>}, {pipeline_mode = #tpu.pipeline_mode<synchronous>, transform_indices = @transform_2, window_bounds = array<i64: 4, 128, 1>}, {pipeline_mode = #tpu.pipeline_mode<synchronous>, transform_indices = @transform_3, window_bounds = array<i64: 128, 1>}, {pipeline_mode = #tpu.pipeline_mode<synchronous>, transform_indices = @transform_4, window_bounds = array<i64: 64, 128>}, {pipeline_mode = #tpu.pipeline_mode<synchronous>, transform_indices = @transform_5, window_bounds = array<i64: 64, 1>}, {pipeline_mode = #tpu.pipeline_mode<synchronous>, transform_indices = @transform_6, window_bounds = array<i64: 128, 64>}, {pipeline_mode = #tpu.pipeline_mode<synchronous>, transform_indices = @transform_7, window_bounds = array<i64: 128, 1>}, {pipeline_mode = #tpu.pipeline_mode<synchronous>, transform_indices = @transform_8, window_bounds = array<i64: 128, 1>}, {pipeline_mode = #tpu.pipeline_mode<synchronous>, transform_indices = @transform_9, window_bounds = array<i64: 8, 128>}, {transform_indices = @transform_10, window_bounds = array<i64: 8, 2>}]} {
    %c0 = arith.constant 0 : index
    %c0_0 = arith.constant 0 : index
    %0 = vector.load %arg2[%c0, %c0_0] : memref<8x2xf32, #tpu.memory_space<vmem>>, vector<8x2xf32>
    %1 = vector.shape_cast %0 : vector<8x2xf32> to vector<8x1x2xf32>
    %2 = vector.shape_cast %0 : vector<8x2xf32> to vector<1x8x2xf32>
    %3 = vector.broadcast %1 : vector<8x1x2xf32> to vector<8x8x2xf32>
    %4 = vector.broadcast %2 : vector<1x8x2xf32> to vector<8x8x2xf32>
    %5 = arith.mulf %3, %4 : vector<8x8x2xf32>
    %c0_1 = arith.constant 0 : index
    %c0_2 = arith.constant 0 : index
    %6 = memref.load %arg1[%c0_1, %c0_2] : memref<5x4xf32, #tpu.memory_space<smem>>
    %c0_3 = arith.constant 0 : index
    %c1 = arith.constant 1 : index
    %7 = memref.load %arg1[%c0_3, %c1] : memref<5x4xf32, #tpu.memory_space<smem>>
    %c0_4 = arith.constant 0 : index
    %c2 = arith.constant 2 : index
    %8 = memref.load %arg1[%c0_4, %c2] : memref<5x4xf32, #tpu.memory_space<smem>>
    %c0_5 = arith.constant 0 : index
    %c3 = arith.constant 3 : index
    %9 = memref.load %arg1[%c0_5, %c3] : memref<5x4xf32, #tpu.memory_space<smem>>
    %10 = vector.broadcast %6 : f32 to vector<8x8x2xf32>
    %11 = arith.mulf %10, %5 : vector<8x8x2xf32>
    %12 = vector.broadcast %7 : f32 to vector<1x8x2xf32>
    %13 = arith.mulf %12, %2 : vector<1x8x2xf32>
    %14 = vector.broadcast %13 : vector<1x8x2xf32> to vector<8x8x2xf32>
    %15 = arith.addf %11, %14 : vector<8x8x2xf32>
    %16 = vector.broadcast %8 : f32 to vector<8x1x2xf32>
    %17 = arith.mulf %16, %1 : vector<8x1x2xf32>
    %18 = vector.broadcast %17 : vector<8x1x2xf32> to vector<8x8x2xf32>
    %19 = arith.addf %15, %18 : vector<8x8x2xf32>
    %20 = vector.broadcast %9 : f32 to vector<8x8x2xf32>
    %21 = arith.addf %19, %20 : vector<8x8x2xf32>
    %cst = arith.constant dense<0xFF800000> : vector<8x2xf32>
    %22 = vector.multi_reduction <maximumf>, %21, %cst [0] : vector<8x8x2xf32> to vector<8x2xf32>
    %23 = vector.shape_cast %22 : vector<8x2xf32> to vector<1x8x2xf32>
    %24 = vector.broadcast %23 : vector<1x8x2xf32> to vector<8x8x2xf32>
    %25 = arith.subf %21, %24 : vector<8x8x2xf32>
    %26 = math.exp %25 : vector<8x8x2xf32>
    %cst_6 = arith.constant dense<0.000000e+00> : vector<8x2xf32>
    %27 = vector.multi_reduction <add>, %26, %cst_6 [0] : vector<8x8x2xf32> to vector<8x2xf32>
    %28 = vector.broadcast %1 : vector<8x1x2xf32> to vector<8x8x2xf32>
    %29 = arith.mulf %26, %28 : vector<8x8x2xf32>
    %cst_7 = arith.constant dense<0.000000e+00> : vector<8x2xf32>
    %30 = vector.multi_reduction <add>, %29, %cst_7 [0] : vector<8x8x2xf32> to vector<8x2xf32>
    %31 = tpu.reciprocal %27 {approx = true} : vector<8x2xf32> -> vector<8x2xf32>
    %32 = arith.mulf %30, %31 : vector<8x2xf32>
    %cst_8 = arith.constant dense<0.000000e+00> : vector<2xf32>
    %33 = vector.multi_reduction <add>, %32, %cst_8 [0] : vector<8x2xf32> to vector<2xf32>
    %34 = vector.shape_cast %33 : vector<2xf32> to vector<1x2xf32>
    %cst_9 = arith.constant 8.000000e+00 : f32
    %35 = vector.broadcast %cst_9 : f32 to vector<1x2xf32>
    %36 = arith.divf %34, %35 : vector<1x2xf32>
    %c1_10 = arith.constant 1 : index
    %c0_11 = arith.constant 0 : index
    %37 = memref.load %arg1[%c1_10, %c0_11] : memref<5x4xf32, #tpu.memory_space<smem>>
    %c1_12 = arith.constant 1 : index
    %c1_13 = arith.constant 1 : index
    %38 = memref.load %arg1[%c1_12, %c1_13] : memref<5x4xf32, #tpu.memory_space<smem>>
    %c1_14 = arith.constant 1 : index
    %c2_15 = arith.constant 2 : index
    %39 = memref.load %arg1[%c1_14, %c2_15] : memref<5x4xf32, #tpu.memory_space<smem>>
    %c1_16 = arith.constant 1 : index
    %c3_17 = arith.constant 3 : index
    %40 = memref.load %arg1[%c1_16, %c3_17] : memref<5x4xf32, #tpu.memory_space<smem>>
    %41 = vector.broadcast %37 : f32 to vector<8x8x2xf32>
    %42 = arith.mulf %41, %5 : vector<8x8x2xf32>
    %43 = vector.broadcast %38 : f32 to vector<1x8x2xf32>
    %44 = arith.mulf %43, %2 : vector<1x8x2xf32>
    %45 = vector.broadcast %44 : vector<1x8x2xf32> to vector<8x8x2xf32>
    %46 = arith.addf %42, %45 : vector<8x8x2xf32>
    %47 = vector.broadcast %39 : f32 to vector<8x1x2xf32>
    %48 = arith.mulf %47, %1 : vector<8x1x2xf32>
    %49 = vector.broadcast %48 : vector<8x1x2xf32> to vector<8x8x2xf32>
    %50 = arith.addf %46, %49 : vector<8x8x2xf32>
    %51 = vector.broadcast %40 : f32 to vector<8x8x2xf32>
    %52 = arith.addf %50, %51 : vector<8x8x2xf32>
    %cst_18 = arith.constant dense<0xFF800000> : vector<8x2xf32>
    %53 = vector.multi_reduction <maximumf>, %52, %cst_18 [0] : vector<8x8x2xf32> to vector<8x2xf32>
    %54 = vector.shape_cast %53 : vector<8x2xf32> to vector<1x8x2xf32>
    %55 = vector.broadcast %54 : vector<1x8x2xf32> to vector<8x8x2xf32>
    %56 = arith.subf %52, %55 : vector<8x8x2xf32>
    %57 = math.exp %56 : vector<8x8x2xf32>
    %cst_19 = arith.constant dense<0.000000e+00> : vector<8x2xf32>
    %58 = vector.multi_reduction <add>, %57, %cst_19 [0] : vector<8x8x2xf32> to vector<8x2xf32>
    %59 = vector.broadcast %1 : vector<8x1x2xf32> to vector<8x8x2xf32>
    %60 = arith.mulf %57, %59 : vector<8x8x2xf32>
    %cst_20 = arith.constant dense<0.000000e+00> : vector<8x2xf32>
    %61 = vector.multi_reduction <add>, %60, %cst_20 [0] : vector<8x8x2xf32> to vector<8x2xf32>
    %62 = tpu.reciprocal %58 {approx = true} : vector<8x2xf32> -> vector<8x2xf32>
    %63 = arith.mulf %61, %62 : vector<8x2xf32>
    %cst_21 = arith.constant dense<0.000000e+00> : vector<2xf32>
    %64 = vector.multi_reduction <add>, %63, %cst_21 [0] : vector<8x2xf32> to vector<2xf32>
    %65 = vector.shape_cast %64 : vector<2xf32> to vector<1x2xf32>
    %cst_22 = arith.constant 8.000000e+00 : f32
    %66 = vector.broadcast %cst_22 : f32 to vector<1x2xf32>
    %67 = arith.divf %65, %66 : vector<1x2xf32>
    %c2_23 = arith.constant 2 : index
    %c0_24 = arith.constant 0 : index
    %68 = memref.load %arg1[%c2_23, %c0_24] : memref<5x4xf32, #tpu.memory_space<smem>>
    %c2_25 = arith.constant 2 : index
    %c1_26 = arith.constant 1 : index
    %69 = memref.load %arg1[%c2_25, %c1_26] : memref<5x4xf32, #tpu.memory_space<smem>>
    %c2_27 = arith.constant 2 : index
    %c2_28 = arith.constant 2 : index
    %70 = memref.load %arg1[%c2_27, %c2_28] : memref<5x4xf32, #tpu.memory_space<smem>>
    %c2_29 = arith.constant 2 : index
    %c3_30 = arith.constant 3 : index
    %71 = memref.load %arg1[%c2_29, %c3_30] : memref<5x4xf32, #tpu.memory_space<smem>>
    %72 = vector.broadcast %68 : f32 to vector<8x8x2xf32>
    %73 = arith.mulf %72, %5 : vector<8x8x2xf32>
    %74 = vector.broadcast %69 : f32 to vector<1x8x2xf32>
    %75 = arith.mulf %74, %2 : vector<1x8x2xf32>
    %76 = vector.broadcast %75 : vector<1x8x2xf32> to vector<8x8x2xf32>
    %77 = arith.addf %73, %76 : vector<8x8x2xf32>
    %78 = vector.broadcast %70 : f32 to vector<8x1x2xf32>
    %79 = arith.mulf %78, %1 : vector<8x1x2xf32>
    %80 = vector.broadcast %79 : vector<8x1x2xf32> to vector<8x8x2xf32>
    %81 = arith.addf %77, %80 : vector<8x8x2xf32>
    %82 = vector.broadcast %71 : f32 to vector<8x8x2xf32>
    %83 = arith.addf %81, %82 : vector<8x8x2xf32>
    %cst_31 = arith.constant dense<0xFF800000> : vector<8x2xf32>
    %84 = vector.multi_reduction <maximumf>, %83, %cst_31 [0] : vector<8x8x2xf32> to vector<8x2xf32>
    %85 = vector.shape_cast %84 : vector<8x2xf32> to vector<1x8x2xf32>
    %86 = vector.broadcast %85 : vector<1x8x2xf32> to vector<8x8x2xf32>
    %87 = arith.subf %83, %86 : vector<8x8x2xf32>
    %88 = math.exp %87 : vector<8x8x2xf32>
    %cst_32 = arith.constant dense<0.000000e+00> : vector<8x2xf32>
    %89 = vector.multi_reduction <add>, %88, %cst_32 [0] : vector<8x8x2xf32> to vector<8x2xf32>
    %90 = vector.broadcast %1 : vector<8x1x2xf32> to vector<8x8x2xf32>
    %91 = arith.mulf %88, %90 : vector<8x8x2xf32>
    %cst_33 = arith.constant dense<0.000000e+00> : vector<8x2xf32>
    %92 = vector.multi_reduction <add>, %91, %cst_33 [0] : vector<8x8x2xf32> to vector<8x2xf32>
    %93 = tpu.reciprocal %89 {approx = true} : vector<8x2xf32> -> vector<8x2xf32>
    %94 = arith.mulf %92, %93 : vector<8x2xf32>
    %cst_34 = arith.constant dense<0.000000e+00> : vector<2xf32>
    %95 = vector.multi_reduction <add>, %94, %cst_34 [0] : vector<8x2xf32> to vector<2xf32>
    %96 = vector.shape_cast %95 : vector<2xf32> to vector<1x2xf32>
    %cst_35 = arith.constant 8.000000e+00 : f32
    %97 = vector.broadcast %cst_35 : f32 to vector<1x2xf32>
    %98 = arith.divf %96, %97 : vector<1x2xf32>
    %c3_36 = arith.constant 3 : index
    %c0_37 = arith.constant 0 : index
    %99 = memref.load %arg1[%c3_36, %c0_37] : memref<5x4xf32, #tpu.memory_space<smem>>
    %c3_38 = arith.constant 3 : index
    %c1_39 = arith.constant 1 : index
    %100 = memref.load %arg1[%c3_38, %c1_39] : memref<5x4xf32, #tpu.memory_space<smem>>
    %c3_40 = arith.constant 3 : index
    %c2_41 = arith.constant 2 : index
    %101 = memref.load %arg1[%c3_40, %c2_41] : memref<5x4xf32, #tpu.memory_space<smem>>
    %c3_42 = arith.constant 3 : index
    %c3_43 = arith.constant 3 : index
    %102 = memref.load %arg1[%c3_42, %c3_43] : memref<5x4xf32, #tpu.memory_space<smem>>
    %103 = vector.broadcast %99 : f32 to vector<8x8x2xf32>
    %104 = arith.mulf %103, %5 : vector<8x8x2xf32>
    %105 = vector.broadcast %100 : f32 to vector<1x8x2xf32>
    %106 = arith.mulf %105, %2 : vector<1x8x2xf32>
    %107 = vector.broadcast %106 : vector<1x8x2xf32> to vector<8x8x2xf32>
    %108 = arith.addf %104, %107 : vector<8x8x2xf32>
    %109 = vector.broadcast %101 : f32 to vector<8x1x2xf32>
    %110 = arith.mulf %109, %1 : vector<8x1x2xf32>
    %111 = vector.broadcast %110 : vector<8x1x2xf32> to vector<8x8x2xf32>
    %112 = arith.addf %108, %111 : vector<8x8x2xf32>
    %113 = vector.broadcast %102 : f32 to vector<8x8x2xf32>
    %114 = arith.addf %112, %113 : vector<8x8x2xf32>
    %cst_44 = arith.constant dense<0xFF800000> : vector<8x2xf32>
    %115 = vector.multi_reduction <maximumf>, %114, %cst_44 [0] : vector<8x8x2xf32> to vector<8x2xf32>
    %116 = vector.shape_cast %115 : vector<8x2xf32> to vector<1x8x2xf32>
    %117 = vector.broadcast %116 : vector<1x8x2xf32> to vector<8x8x2xf32>
    %118 = arith.subf %114, %117 : vector<8x8x2xf32>
    %119 = math.exp %118 : vector<8x8x2xf32>
    %cst_45 = arith.constant dense<0.000000e+00> : vector<8x2xf32>
    %120 = vector.multi_reduction <add>, %119, %cst_45 [0] : vector<8x8x2xf32> to vector<8x2xf32>
    %121 = vector.broadcast %1 : vector<8x1x2xf32> to vector<8x8x2xf32>
    %122 = arith.mulf %119, %121 : vector<8x8x2xf32>
    %cst_46 = arith.constant dense<0.000000e+00> : vector<8x2xf32>
    %123 = vector.multi_reduction <add>, %122, %cst_46 [0] : vector<8x8x2xf32> to vector<8x2xf32>
    %124 = tpu.reciprocal %120 {approx = true} : vector<8x2xf32> -> vector<8x2xf32>
    %125 = arith.mulf %123, %124 : vector<8x2xf32>
    %cst_47 = arith.constant dense<0.000000e+00> : vector<2xf32>
    %126 = vector.multi_reduction <add>, %125, %cst_47 [0] : vector<8x2xf32> to vector<2xf32>
    %127 = vector.shape_cast %126 : vector<2xf32> to vector<1x2xf32>
    %cst_48 = arith.constant 8.000000e+00 : f32
    %128 = vector.broadcast %cst_48 : f32 to vector<1x2xf32>
    %129 = arith.divf %127, %128 : vector<1x2xf32>
    %c0_49 = arith.constant 0 : index
    %c0_50 = arith.constant 0 : index
    %130 = vector.load %arg4[%c0_49, %c0_50] : memref<128x1xf32, #tpu.memory_space<vmem>>, vector<128x1xf32>
    %c0_51 = arith.constant 0 : index
    %c0_52 = arith.constant 0 : index
    %c0_53 = arith.constant 0 : index
    %131 = vector.load %arg3[%c0_51, %c0_52, %c0_53] : memref<4x128x1xf32, #tpu.memory_space<vmem>>, vector<1x128x1xf32>
    %132 = vector.shape_cast %131 : vector<1x128x1xf32> to vector<128x1xf32>
    %133 = vector.broadcast %132 : vector<128x1xf32> to vector<128x2xf32>
    %134 = vector.broadcast %36 : vector<1x2xf32> to vector<128x2xf32>
    %135 = arith.mulf %133, %134 : vector<128x2xf32>
    %136 = vector.broadcast %130 : vector<128x1xf32> to vector<128x2xf32>
    %137 = arith.addf %136, %135 : vector<128x2xf32>
    %c1_54 = arith.constant 1 : index
    %c0_55 = arith.constant 0 : index
    %c0_56 = arith.constant 0 : index
    %138 = vector.load %arg3[%c1_54, %c0_55, %c0_56] : memref<4x128x1xf32, #tpu.memory_space<vmem>>, vector<1x128x1xf32>
    %139 = vector.shape_cast %138 : vector<1x128x1xf32> to vector<128x1xf32>
    %140 = vector.broadcast %139 : vector<128x1xf32> to vector<128x2xf32>
    %141 = vector.broadcast %67 : vector<1x2xf32> to vector<128x2xf32>
    %142 = arith.mulf %140, %141 : vector<128x2xf32>
    %143 = arith.addf %137, %142 : vector<128x2xf32>
    %c2_57 = arith.constant 2 : index
    %c0_58 = arith.constant 0 : index
    %c0_59 = arith.constant 0 : index
    %144 = vector.load %arg3[%c2_57, %c0_58, %c0_59] : memref<4x128x1xf32, #tpu.memory_space<vmem>>, vector<1x128x1xf32>
    %145 = vector.shape_cast %144 : vector<1x128x1xf32> to vector<128x1xf32>
    %146 = vector.broadcast %145 : vector<128x1xf32> to vector<128x2xf32>
    %147 = vector.broadcast %98 : vector<1x2xf32> to vector<128x2xf32>
    %148 = arith.mulf %146, %147 : vector<128x2xf32>
    %149 = arith.addf %143, %148 : vector<128x2xf32>
    %c3_60 = arith.constant 3 : index
    %c0_61 = arith.constant 0 : index
    %c0_62 = arith.constant 0 : index
    %150 = vector.load %arg3[%c3_60, %c0_61, %c0_62] : memref<4x128x1xf32, #tpu.memory_space<vmem>>, vector<1x128x1xf32>
    %151 = vector.shape_cast %150 : vector<1x128x1xf32> to vector<128x1xf32>
    %152 = vector.broadcast %151 : vector<128x1xf32> to vector<128x2xf32>
    %153 = vector.broadcast %129 : vector<1x2xf32> to vector<128x2xf32>
    %154 = arith.mulf %152, %153 : vector<128x2xf32>
    %155 = arith.addf %149, %154 : vector<128x2xf32>
    %c0_63 = arith.constant 0 : index
    %c0_64 = arith.constant 0 : index
    %156 = vector.load %arg5[%c0_63, %c0_64] : memref<64x128xf32, #tpu.memory_space<vmem>>, vector<64x128xf32>
    %cst_65 = arith.constant dense<0.000000e+00> : vector<64x2xf32>
    %157 = tpu.matmul %156, %155, %cst_65 {dimension_numbers = #tpu.dot_dimension_numbers<[1], [0], [0], [1], [0, 0, 1, 1], [], []>} : vector<64x128xf32>, vector<128x2xf32>, vector<64x2xf32> -> vector<64x2xf32>
    %c0_66 = arith.constant 0 : index
    %c0_67 = arith.constant 0 : index
    %158 = vector.load %arg6[%c0_66, %c0_67] : memref<64x1xf32, #tpu.memory_space<vmem>>, vector<64x1xf32>
    %159 = vector.broadcast %158 : vector<64x1xf32> to vector<64x2xf32>
    %160 = arith.addf %157, %159 : vector<64x2xf32>
    %c0_68 = arith.constant 0 : index
    %c0_69 = arith.constant 0 : index
    %161 = vector.load %arg7[%c0_68, %c0_69] : memref<128x64xf32, #tpu.memory_space<vmem>>, vector<128x64xf32>
    %cst_70 = arith.constant dense<0.000000e+00> : vector<128x2xf32>
    %162 = tpu.matmul %161, %160, %cst_70 {dimension_numbers = #tpu.dot_dimension_numbers<[1], [0], [0], [1], [0, 0, 1, 1], [], []>} : vector<128x64xf32>, vector<64x2xf32>, vector<128x2xf32> -> vector<128x2xf32>
    %c0_71 = arith.constant 0 : index
    %c0_72 = arith.constant 0 : index
    %163 = vector.load %arg8[%c0_71, %c0_72] : memref<128x1xf32, #tpu.memory_space<vmem>>, vector<128x1xf32>
    %164 = vector.broadcast %163 : vector<128x1xf32> to vector<128x2xf32>
    %165 = arith.addf %162, %164 : vector<128x2xf32>
    %166 = arith.negf %165 : vector<128x2xf32>
    %167 = math.exp %166 : vector<128x2xf32>
    %cst_73 = arith.constant 1.000000e+00 : f32
    %168 = vector.broadcast %cst_73 : f32 to vector<128x2xf32>
    %169 = arith.addf %168, %167 : vector<128x2xf32>
    %170 = arith.divf %168, %169 : vector<128x2xf32>
    %c0_74 = arith.constant 0 : index
    %c0_75 = arith.constant 0 : index
    %171 = vector.load %arg9[%c0_74, %c0_75] : memref<128x1xf32, #tpu.memory_space<vmem>>, vector<128x1xf32>
    %172 = vector.broadcast %171 : vector<128x1xf32> to vector<128x2xf32>
    %173 = arith.mulf %170, %172 : vector<128x2xf32>
    %c0_76 = arith.constant 0 : index
    %c0_77 = arith.constant 0 : index
    %174 = vector.load %arg10[%c0_76, %c0_77] : memref<8x128xf32, #tpu.memory_space<vmem>>, vector<8x128xf32>
    %cst_78 = arith.constant dense<0.000000e+00> : vector<8x2xf32>
    %175 = tpu.matmul %174, %173, %cst_78 {dimension_numbers = #tpu.dot_dimension_numbers<[1], [0], [0], [1], [0, 0, 1, 1], [], []>} : vector<8x128xf32>, vector<128x2xf32>, vector<8x2xf32> -> vector<8x2xf32>
    %c4 = arith.constant 4 : index
    %c0_79 = arith.constant 0 : index
    %176 = memref.load %arg1[%c4, %c0_79] : memref<5x4xf32, #tpu.memory_space<smem>>
    %177 = vector.extract_strided_slice %175 {offsets = [4, 0], sizes = [1, 2], strides = [1, 1]} : vector<8x2xf32> to vector<1x2xf32>
    %178 = vector.broadcast %176 : f32 to vector<1x2xf32>
    %179 = arith.addf %177, %178 : vector<1x2xf32>
    %180 = vector.extract_strided_slice %175 {offsets = [0, 0], sizes = [1, 2], strides = [1, 1]} : vector<8x2xf32> to vector<1x2xf32>
    %181 = vector.broadcast %180 : vector<1x2xf32> to vector<8x2xf32>
    %182 = arith.mulf %32, %181 : vector<8x2xf32>
    %183 = vector.broadcast %179 : vector<1x2xf32> to vector<8x2xf32>
    %184 = arith.addf %183, %182 : vector<8x2xf32>
    %185 = vector.extract_strided_slice %175 {offsets = [1, 0], sizes = [1, 2], strides = [1, 1]} : vector<8x2xf32> to vector<1x2xf32>
    %186 = vector.broadcast %185 : vector<1x2xf32> to vector<8x2xf32>
    %187 = arith.mulf %63, %186 : vector<8x2xf32>
    %188 = arith.addf %184, %187 : vector<8x2xf32>
    %189 = vector.extract_strided_slice %175 {offsets = [2, 0], sizes = [1, 2], strides = [1, 1]} : vector<8x2xf32> to vector<1x2xf32>
    %190 = vector.broadcast %189 : vector<1x2xf32> to vector<8x2xf32>
    %191 = arith.mulf %94, %190 : vector<8x2xf32>
    %192 = arith.addf %188, %191 : vector<8x2xf32>
    %193 = vector.extract_strided_slice %175 {offsets = [3, 0], sizes = [1, 2], strides = [1, 1]} : vector<8x2xf32> to vector<1x2xf32>
    %194 = vector.broadcast %193 : vector<1x2xf32> to vector<8x2xf32>
    %195 = arith.mulf %125, %194 : vector<8x2xf32>
    %196 = arith.addf %192, %195 : vector<8x2xf32>
    %c0_80 = arith.constant 0 : index
    %c0_81 = arith.constant 0 : index
    %197 = vector.load %arg11[%c0_80, %c0_81] : memref<8x2xf32, #tpu.memory_space<vmem>>, vector<8x2xf32>
    tpu.vector_store %arg11[%c0_80, %c0_81], %196 {strides = array<i32>} : memref<8x2xf32, #tpu.memory_space<vmem>>, vector<8x2xf32>,
    return
  }
  func.func @transform_0(%arg0: i32) -> (i32, i32) {
    %c0_i32 = arith.constant 0 : i32
    %c0_i32_0 = arith.constant 0 : i32
    %c0_i32_1 = arith.constant 0 : i32
    return %c0_i32, %c0_i32_0 : i32, i32
  }
  func.func @transform_1(%arg0: i32) -> (i32, i32) {
    %c0_i32 = arith.constant 0 : i32
    %c0_i32_0 = arith.constant 0 : i32
    return %c0_i32, %arg0 : i32, i32
  }
  func.func @transform_2(%arg0: i32) -> (i32, i32, i32) {
    %c0_i32 = arith.constant 0 : i32
    %c0_i32_0 = arith.constant 0 : i32
    %c0_i32_1 = arith.constant 0 : i32
    %c0_i32_2 = arith.constant 0 : i32
    return %c0_i32, %c0_i32_0, %c0_i32_1 : i32, i32, i32
  }
  func.func @transform_3(%arg0: i32) -> (i32, i32) {
    %c0_i32 = arith.constant 0 : i32
    %c0_i32_0 = arith.constant 0 : i32
    %c0_i32_1 = arith.constant 0 : i32
    return %c0_i32, %c0_i32_0 : i32, i32
  }
  func.func @transform_4(%arg0: i32) -> (i32, i32) {
    %c0_i32 = arith.constant 0 : i32
    %c0_i32_0 = arith.constant 0 : i32
    %c0_i32_1 = arith.constant 0 : i32
    return %c0_i32, %c0_i32_0 : i32, i32
  }
  func.func @transform_5(%arg0: i32) -> (i32, i32) {
    %c0_i32 = arith.constant 0 : i32
    %c0_i32_0 = arith.constant 0 : i32
    %c0_i32_1 = arith.constant 0 : i32
    return %c0_i32, %c0_i32_0 : i32, i32
  }
  func.func @transform_6(%arg0: i32) -> (i32, i32) {
    %c0_i32 = arith.constant 0 : i32
    %c0_i32_0 = arith.constant 0 : i32
    %c0_i32_1 = arith.constant 0 : i32
    return %c0_i32, %c0_i32_0 : i32, i32
  }
  func.func @transform_7(%arg0: i32) -> (i32, i32) {
    %c0_i32 = arith.constant 0 : i32
    %c0_i32_0 = arith.constant 0 : i32
    %c0_i32_1 = arith.constant 0 : i32
    return %c0_i32, %c0_i32_0 : i32, i32
  }
  func.func @transform_8(%arg0: i32) -> (i32, i32) {
    %c0_i32 = arith.constant 0 : i32
    %c0_i32_0 = arith.constant 0 : i32
    %c0_i32_1 = arith.constant 0 : i32
    return %c0_i32, %c0_i32_0 : i32, i32
  }
  func.func @transform_9(%arg0: i32) -> (i32, i32) {
    %c0_i32 = arith.constant 0 : i32
    %c0_i32_0 = arith.constant 0 : i32
    %c0_i32_1 = arith.constant 0 : i32
    return %c0_i32, %c0_i32_0 : i32, i32
  }
  func.func @transform_10(%arg0: i32) -> (i32, i32) {
    %c0_i32 = arith.constant 0 : i32
    %c0_i32_0 = arith.constant 0 : i32
    return %c0_i32, %arg0 : i32, i32
  }
}

</mosaic_0001>

<llo_original>
// kernel: tpu_custom_call.1
$region0: #{tpu_custom_call.1}
  #allocation0 [shape = 'u32[]', space=smem, size = 0x4, offset = 0x4, fixed_abs, tag = 'smem constant byte address 0x4 - core index']
  #allocation1 [shape = 'u32[144,128]{1,0:T(1,128)}', space=vmem, size = 0x12000, scoped, tag = 'internal scratch']
  %s0 = inlined_call_operand.vmem [shape: f32[5,4], index: 0, kind: input, shape index: {}]
  %s1 = inlined_call_operand.vmem [shape: f32[8,2], index: 1, kind: input, shape index: {}]
  %s2 = inlined_call_operand.vmem [shape: f32[4,128,1], index: 2, kind: input, shape index: {}]
  %s3 = inlined_call_operand.vmem [shape: f32[128,1], index: 3, kind: input, shape index: {}]
  %s4 = inlined_call_operand.vmem [shape: f32[64,128], index: 4, kind: input, shape index: {}]
  %s5 = inlined_call_operand.vmem [shape: f32[64,1], index: 5, kind: input, shape index: {}]
  %s6 = inlined_call_operand.vmem [shape: f32[128,64], index: 6, kind: input, shape index: {}]
  %s7 = inlined_call_operand.vmem [shape: f32[128,1], index: 7, kind: input, shape index: {}]
  %s8 = inlined_call_operand.vmem [shape: f32[128,1], index: 8, kind: input, shape index: {}]
  %s9 = inlined_call_operand.vmem [shape: f32[8,128], index: 9, kind: input, shape index: {}]
  %s10 = inlined_call_operand.vmem [shape: f32[8,2], index: 10, kind: output, shape index: {}]
  %s11 = sld [smem:[#allocation0]]
  $region54: #{tpu_custom_call.1} parent=0
    _
  %s13 = ssub.s32 1, %s11
  %s14 = scalar_select 0, %s13, %s11
  $region1: #{tpu_custom_call.1} parent=0
    #allocation2 [shape = 'u8[4096]{0}', space=smem, size = 0x1000, scoped, tag = 'input window, operand 0, single buffered']
    #allocation3 [shape = 's32[1]{0}', space=sflag, size = 0x4, scoped, tag = 'scoped memory for tpu_custom_call.1']
    %15 = vsyncpa [#allocation3], 0
    // Predicated region
    $region2: #{tpu_custom_call.1} parent=1 // pred_check
      _
    $region3: #{tpu_custom_call.1} parent=1 // pred_check_branch
      %17 = sbr.rel (0) target = $region5
    $region4: #{tpu_custom_call.1} parent=1 // pred_region
      %s19 = ssub.s32 128, 128
      %20 = vsyncadd [#allocation3], %s19
      %s22 = sshll.u32 %s0, 4
      %s23 = int_to_ptr.vmem [resolvable:$true] %s22
      %25 = dma.vmem_to_smem %s23, 128, [#allocation2], [#allocation3]
    $region5: #{tpu_custom_call.1} parent=1 // pred_fallthru
      _
    // Predicated region
    $region6: #{tpu_custom_call.1} parent=1 // pred_check
      _
    $region7: #{tpu_custom_call.1} parent=1 // pred_check_branch
      %27 = sbr.rel (0) target = $region9
    $region8: #{tpu_custom_call.1} parent=1 // pred_region
      _
    $region9: #{tpu_custom_call.1} parent=1 // pred_fallthru
      _
    // Predicated region
    $region10: #{tpu_custom_call.1} parent=1 // pred_check
      _
    $region11: #{tpu_custom_call.1} parent=1 // pred_check_branch
      %29 = sbr.rel (0) target = $region13
    $region12: #{tpu_custom_call.1} parent=1 // pred_region
      _
    $region13: #{tpu_custom_call.1} parent=1 // pred_fallthru
      _
    // Predicated region
    $region14: #{tpu_custom_call.1} parent=1 // pred_check
      _
    $region15: #{tpu_custom_call.1} parent=1 // pred_check_branch
      %31 = sbr.rel (0) target = $region17
    $region16: #{tpu_custom_call.1} parent=1 // pred_region
      _
    $region17: #{tpu_custom_call.1} parent=1 // pred_fallthru
      _
    // Predicated region
    $region18: #{tpu_custom_call.1} parent=1 // pred_check
      _
    $region19: #{tpu_custom_call.1} parent=1 // pred_check_branch
      %33 = sbr.rel (0) target = $region21
    $region20: #{tpu_custom_call.1} parent=1 // pred_region
      _
    $region21: #{tpu_custom_call.1} parent=1 // pred_fallthru
      _
    // Predicated region
    $region22: #{tpu_custom_call.1} parent=1 // pred_check
      _
    $region23: #{tpu_custom_call.1} parent=1 // pred_check_branch
      %35 = sbr.rel (0) target = $region25
    $region24: #{tpu_custom_call.1} parent=1 // pred_region
      _
    $region25: #{tpu_custom_call.1} parent=1 // pred_fallthru
      _
    // Predicated region
    $region26: #{tpu_custom_call.1} parent=1 // pred_check
      _
    $region27: #{tpu_custom_call.1} parent=1 // pred_check_branch
      %37 = sbr.rel (0) target = $region29
    $region28: #{tpu_custom_call.1} parent=1 // pred_region
      _
    $region29: #{tpu_custom_call.1} parent=1 // pred_fallthru
      _
    // Predicated region
    $region30: #{tpu_custom_call.1} parent=1 // pred_check
      _
    $region31: #{tpu_custom_call.1} parent=1 // pred_check_branch
      %39 = sbr.rel (0) target = $region33
    $region32: #{tpu_custom_call.1} parent=1 // pred_region
      _
    $region33: #{tpu_custom_call.1} parent=1 // pred_fallthru
      _
    // Predicated region
    $region34: #{tpu_custom_call.1} parent=1 // pred_check
      _
    $region35: #{tpu_custom_call.1} parent=1 // pred_check_branch
      %41 = sbr.rel (0) target = $region37
    $region36: #{tpu_custom_call.1} parent=1 // pred_region
      _
    $region37: #{tpu_custom_call.1} parent=1 // pred_fallthru
      _
    // Predicated region
    $region38: #{tpu_custom_call.1} parent=1 // pred_check
      _
    $region39: #{tpu_custom_call.1} parent=1 // pred_check_branch
      %43 = sbr.rel (0) target = $region41
    $region40: #{tpu_custom_call.1} parent=1 // pred_region
      _
    $region41: #{tpu_custom_call.1} parent=1 // pred_fallthru
      _
    // Predicated region
    $region42: #{tpu_custom_call.1} parent=1 // pred_check
      _
    $region43: #{tpu_custom_call.1} parent=1 // pred_check_branch
      %45 = sbr.rel (0) target = $region45
    $region44: #{tpu_custom_call.1} parent=1 // pred_region
      %46 = dma.done [#allocation3], 128
    $region45: #{tpu_custom_call.1} parent=1 // pred_fallthru
      _
    %47 = sfence
    %v48 = vld [vmem:[%s1] sm:$0xff]
    %v50 = vcombine.high %v48, %v48
    %v52 = vunpack.c.l.s4 1966171168
    %v53 = vunpack.c.0.s8 %v52
    %v54 = vlaneseq
    %v55 = vshrl.u32 %v54, 7
    %v56 = vsub.s32 %v53, %v55
    %v57 = vrot.slane %v48, %v56
    %v59 = vunpack.c.l.s4 1966171168
    %v60 = vunpack.c.0.s8 %v59
    %v61 = vlaneseq
    %v62 = vshrl.u32 %v61, 7
    %v63 = vsub.s32 %v60, %v62
    %v64 = vrot.slane %v50, %v63
    %v65 = vcombine.high %v57, %v57
    %v66 = vcombine.high %v64, %v64
    %v68 = vunpack.c.l.s4 1966171168
    %v69 = vunpack.c.0.s8 %v68
    %v70 = vlaneseq
    %v71 = vshrl.u32 %v70, 7
    %v72 = vsub.s32 %v69, %v71
    %v73 = vrot.slane %v57, %v72
    %v75 = vunpack.c.l.s4 1966171168
    %v76 = vunpack.c.0.s8 %v75
    %v77 = vlaneseq
    %v78 = vshrl.u32 %v77, 7
    %v79 = vsub.s32 %v76, %v78
    %v80 = vrot.slane %v64, %v79
    %v82 = vunpack.c.l.s4 1966171168
    %v83 = vunpack.c.0.s8 %v82
    %v84 = vlaneseq
    %v85 = vshrl.u32 %v84, 7
    %v86 = vsub.s32 %v83, %v85
    %v87 = vrot.slane %v65, %v86
    %v89 = vunpack.c.l.s4 1966171168
    %v90 = vunpack.c.0.s8 %v89
    %v91 = vlaneseq
    %v92 = vshrl.u32 %v91, 7
    %v93 = vsub.s32 %v90, %v92
    %v94 = vrot.slane %v66, %v93
    %v95 = vcombine.high %v73, %v73
    %v96 = vcombine.high %v80, %v80
    %v97 = vcombine.high %v87, %v87
    %v98 = vcombine.high %v94, %v94
    %v107 = vlaneseq
    %v108 = vshrl.u32 %v107, 7
    %v109 = vsub.s32 0, %v108
    %v110 = vrot.slane %v73, %v109
    %v111 = vlaneseq
    %v112 = vshrl.u32 %v111, 7
    %v113 = vsub.s32 0, %v112
    %v114 = vrot.slane %v87, %v113
    %v115 = vlaneseq
    %v116 = vshrl.u32 %v115, 7
    %v117 = vsub.s32 0, %v116
    %v118 = vrot.slane %v95, %v117
    %v119 = vlaneseq
    %v120 = vshrl.u32 %v119, 7
    %v121 = vsub.s32 0, %v120
    %v122 = vrot.slane %v97, %v121
    %v123 = vlaneseq
    %v124 = vshrl.u32 %v123, 7
    %v125 = vsub.s32 0, %v124
    %v126 = vrot.slane %v80, %v125
    %v127 = vlaneseq
    %v128 = vshrl.u32 %v127, 7
    %v129 = vsub.s32 0, %v128
    %v130 = vrot.slane %v94, %v129
    %v131 = vlaneseq
    %v132 = vshrl.u32 %v131, 7
    %v133 = vsub.s32 0, %v132
    %v134 = vrot.slane %v96, %v133
    %v135 = vlaneseq
    %v136 = vshrl.u32 %v135, 7
    %v137 = vsub.s32 0, %v136
    %v138 = vrot.slane %v98, %v137
    %v147 = vmul.f32 %v110, %v48
    %v148 = vmul.f32 %v114, %v48
    %v149 = vmul.f32 %v118, %v48
    %v150 = vmul.f32 %v122, %v48
    %v151 = vmul.f32 %v126, %v48
    %v152 = vmul.f32 %v130, %v48
    %v153 = vmul.f32 %v134, %v48
    %v154 = vmul.f32 %v138, %v48
    %s155 = sld [smem:[#allocation2]]
    %s156 = sld [smem:[#allocation2 + $0x1]]
    %s157 = sld [smem:[#allocation2 + $0x2]]
    %s158 = sld [smem:[#allocation2 + $0x3]]
    %v159 = vstv %s155
    %v160 = vmul.f32 %v159, %v147
    %v161 = vmul.f32 %v159, %v148
    %v162 = vmul.f32 %v159, %v149
    %v163 = vmul.f32 %v159, %v150
    %v164 = vmul.f32 %v159, %v151
    %v165 = vmul.f32 %v159, %v152
    %v166 = vmul.f32 %v159, %v153
    %v167 = vmul.f32 %v159, %v154
    %v168 = vstv %s156
    %v169 = vmul.f32 %v168, %v48
    %v170 = vadd.f32 %v160, %v169
    %v171 = vadd.f32 %v161, %v169
    %v172 = vadd.f32 %v162, %v169
    %v173 = vadd.f32 %v163, %v169
    %v174 = vadd.f32 %v164, %v169
    %v175 = vadd.f32 %v165, %v169
    %v176 = vadd.f32 %v166, %v169
    %v177 = vadd.f32 %v167, %v169
    %v178 = vstv %s157
    %v179 = vmul.f32 %v178, %v73
    %v180 = vmul.f32 %v178, %v87
    %v181 = vmul.f32 %v178, %v95
    %v182 = vmul.f32 %v178, %v97
    %v183 = vmul.f32 %v178, %v80
    %v184 = vmul.f32 %v178, %v94
    %v185 = vmul.f32 %v178, %v96
    %v186 = vmul.f32 %v178, %v98
    %v195 = vlaneseq
    %v196 = vshrl.u32 %v195, 7
    %v197 = vsub.s32 0, %v196
    %v198 = vrot.slane %v179, %v197
    %v199 = vlaneseq
    %v200 = vshrl.u32 %v199, 7
    %v201 = vsub.s32 0, %v200
    %v202 = vrot.slane %v180, %v201
    %v203 = vlaneseq
    %v204 = vshrl.u32 %v203, 7
    %v205 = vsub.s32 0, %v204
    %v206 = vrot.slane %v181, %v205
    %v207 = vlaneseq
    %v208 = vshrl.u32 %v207, 7
    %v209 = vsub.s32 0, %v208
    %v210 = vrot.slane %v182, %v209
    %v211 = vlaneseq
    %v212 = vshrl.u32 %v211, 7
    %v213 = vsub.s32 0, %v212
    %v214 = vrot.slane %v183, %v213
    %v215 = vlaneseq
    %v216 = vshrl.u32 %v215, 7
    %v217 = vsub.s32 0, %v216
    %v218 = vrot.slane %v184, %v217
    %v219 = vlaneseq
    %v220 = vshrl.u32 %v219, 7
    %v221 = vsub.s32 0, %v220
    %v222 = vrot.slane %v185, %v221
    %v223 = vlaneseq
    %v224 = vshrl.u32 %v223, 7
    %v225 = vsub.s32 0, %v224
    %v226 = vrot.slane %v186, %v225
    %v235 = vadd.f32 %v170, %v198
    %v236 = vadd.f32 %v171, %v202
    %v237 = vadd.f32 %v172, %v206
    %v238 = vadd.f32 %v173, %v210
    %v239 = vadd.f32 %v174, %v214
    %v240 = vadd.f32 %v175, %v218
    %v241 = vadd.f32 %v176, %v222
    %v242 = vadd.f32 %v177, %v226
    %v243 = vstv %s158
    %v244 = vadd.f32 %v235, %v243
    %v245 = vadd.f32 %v236, %v243
    %v246 = vadd.f32 %v237, %v243
    %v247 = vadd.f32 %v238, %v243
    %v248 = vadd.f32 %v239, %v243
    %v249 = vadd.f32 %v240, %v243
    %v250 = vadd.f32 %v241, %v243
    %v251 = vadd.f32 %v242, %v243
    %vm252 = vcmask 15360
    %v253 = vsel %vm252, %v244, -inf
    %v254 = vsel %vm252, %v245, -inf
    %v255 = vsel %vm252, %v246, -inf
    %v256 = vsel %vm252, %v247, -inf
    %v257 = vsel %vm252, %v248, -inf
    %v258 = vmax.f32 %v253, %v257
    %v259 = vsel %vm252, %v249, -inf
    %v260 = vmax.f32 %v254, %v259
    %v261 = vsel %vm252, %v250, -inf
    %v262 = vmax.f32 %v255, %v261
    %v263 = vsel %vm252, %v251, -inf
    %v264 = vmax.f32 %v256, %v263
    %v265 = vmax.f32 %v258, %v260
    %v266 = vmax.f32 %v262, %v264
    %v267 = vmax.f32 %v265, %v266
    %v268 = vsub.f32 %v244, %v267
    %v269 = vsub.f32 %v245, %v267
    %v270 = vsub.f32 %v246, %v267
    %v271 = vsub.f32 %v247, %v267
    %v272 = vsub.f32 %v248, %v267
    %v273 = vsub.f32 %v249, %v267
    %v274 = vsub.f32 %v250, %v267
    %v275 = vsub.f32 %v251, %v267
    %v276 = vmul.f32 %v268, 1.442695
    %v277 = vpow.pop %v276
    %v278 = vmul.f32 %v269, 1.442695
    %v279 = vpow.pop %v278
    %v280 = vmul.f32 %v270, 1.442695
    %v281 = vpow.pop %v280
    %v282 = vmul.f32 %v271, 1.442695
    %v283 = vpow.pop %v282
    %v284 = vmul.f32 %v272, 1.442695
    %v285 = vpow.pop %v284
    %v286 = vmul.f32 %v273, 1.442695
    %v287 = vpow.pop %v286
    %v288 = vmul.f32 %v274, 1.442695
    %v289 = vpow.pop %v288
    %v290 = vmul.f32 %v275, 1.442695
    %v291 = vpow.pop %v290
    %v292 = vsel %vm252, %v277, 0.0
    %v293 = vsel %vm252, %v279, 0.0
    %v294 = vadd.f32 %v292, %v293
    %v295 = vsel %vm252, %v281, 0.0
    %v296 = vadd.f32 %v294, %v295
    %v297 = vsel %vm252, %v283, 0.0
    %v298 = vadd.f32 %v296, %v297
    %v299 = vsel %vm252, %v285, 0.0
    %v300 = vadd.f32 %v298, %v299
    %v301 = vsel %vm252, %v287, 0.0
    %v302 = vadd.f32 %v300, %v301
    %v303 = vsel %vm252, %v289, 0.0
    %v304 = vadd.f32 %v302, %v303
    %v305 = vsel %vm252, %v291, 0.0
    %v306 = vadd.f32 %v304, %v305
    %v307 = vmul.f32 %v277, %v110
    %v308 = vmul.f32 %v279, %v114
    %v309 = vmul.f32 %v281, %v118
    %v310 = vmul.f32 %v283, %v122
    %v311 = vmul.f32 %v285, %v126
    %v312 = vmul.f32 %v287, %v130
    %v313 = vmul.f32 %v289, %v134
    %v314 = vmul.f32 %v291, %v138
    %v315 = vsel %vm252, %v307, 0.0
    %v316 = vsel %vm252, %v308, 0.0
    %v317 = vadd.f32 %v315, %v316
    %v318 = vsel %vm252, %v309, 0.0
    %v319 = vadd.f32 %v317, %v318
    %v320 = vsel %vm252, %v310, 0.0
    %v321 = vadd.f32 %v319, %v320
    %v322 = vsel %vm252, %v311, 0.0
    %v323 = vadd.f32 %v321, %v322
    %v324 = vsel %vm252, %v312, 0.0
    %v325 = vadd.f32 %v323, %v324
    %v326 = vsel %vm252, %v313, 0.0
    %v327 = vadd.f32 %v325, %v326
    %v328 = vsel %vm252, %v314, 0.0
    %v329 = vadd.f32 %v327, %v328
    %v330 = vrcp.pop %v306
    %v331 = vmul.f32 %v329, %v330
    %v332 = vsel %vm252, %v331, 0.0
    %v333 = vrot.slane %v332, 4
    %v334 = vadd.f32 %v332, %v333
    %v335 = vrot.slane %v334, 2
    %v336 = vadd.f32 %v334, %v335
    %v337 = vrot.slane %v336, 1
    %v338 = vadd.f32 %v336, %v337
    %v339 = vrcp.pop 8.0
    %v340 = vmul.f32 %v338, %v339
    %s341 = sld [smem:[#allocation2 + $0x80]]
    %s342 = sld [smem:[#allocation2 + $0x81]]
    %s343 = sld [smem:[#allocation2 + $0x82]]
    %s344 = sld [smem:[#allocation2 + $0x83]]
    %v345 = vstv %s341
    %v346 = vmul.f32 %v345, %v147
    %v347 = vmul.f32 %v345, %v148
    %v348 = vmul.f32 %v345, %v149
    %v349 = vmul.f32 %v345, %v150
    %v350 = vmul.f32 %v345, %v151
    %v351 = vmul.f32 %v345, %v152
    %v352 = vmul.f32 %v345, %v153
    %v353 = vmul.f32 %v345, %v154
    %v354 = vstv %s342
    %v355 = vmul.f32 %v354, %v48
    %v356 = vadd.f32 %v346, %v355
    %v357 = vadd.f32 %v347, %v355
    %v358 = vadd.f32 %v348, %v355
    %v359 = vadd.f32 %v349, %v355
    %v360 = vadd.f32 %v350, %v355
    %v361 = vadd.f32 %v351, %v355
    %v362 = vadd.f32 %v352, %v355
    %v363 = vadd.f32 %v353, %v355
    %v364 = vstv %s343
    %v365 = vmul.f32 %v364, %v73
    %v366 = vmul.f32 %v364, %v87
    %v367 = vmul.f32 %v364, %v95
    %v368 = vmul.f32 %v364, %v97
    %v369 = vmul.f32 %v364, %v80
    %v370 = vmul.f32 %v364, %v94
    %v371 = vmul.f32 %v364, %v96
    %v372 = vmul.f32 %v364, %v98
    %v381 = vlaneseq
    %v382 = vshrl.u32 %v381, 7
    %v383 = vsub.s32 0, %v382
    %v384 = vrot.slane %v365, %v383
    %v385 = vlaneseq
    %v386 = vshrl.u32 %v385, 7
    %v387 = vsub.s32 0, %v386
    %v388 = vrot.slane %v366, %v387
    %v389 = vlaneseq
    %v390 = vshrl.u32 %v389, 7
    %v391 = vsub.s32 0, %v390
    %v392 = vrot.slane %v367, %v391
    %v393 = vlaneseq
    %v394 = vshrl.u32 %v393, 7
    %v395 = vsub.s32 0, %v394
    %v396 = vrot.slane %v368, %v395
    %v397 = vlaneseq
    %v398 = vshrl.u32 %v397, 7
    %v399 = vsub.s32 0, %v398
    %v400 = vrot.slane %v369, %v399
    %v401 = vlaneseq
    %v402 = vshrl.u32 %v401, 7
    %v403 = vsub.s32 0, %v402
    %v404 = vrot.slane %v370, %v403
    %v405 = vlaneseq
    %v406 = vshrl.u32 %v405, 7
    %v407 = vsub.s32 0, %v406
    %v408 = vrot.slane %v371, %v407
    %v409 = vlaneseq
    %v410 = vshrl.u32 %v409, 7
    %v411 = vsub.s32 0, %v410
    %v412 = vrot.slane %v372, %v411
    %v421 = vadd.f32 %v356, %v384
    %v422 = vadd.f32 %v357, %v388
    %v423 = vadd.f32 %v358, %v392
    %v424 = vadd.f32 %v359, %v396
    %v425 = vadd.f32 %v360, %v400
    %v426 = vadd.f32 %v361, %v404
    %v427 = vadd.f32 %v362, %v408
    %v428 = vadd.f32 %v363, %v412
    %v429 = vstv %s344
    %v430 = vadd.f32 %v421, %v429
    %v431 = vadd.f32 %v422, %v429
    %v432 = vadd.f32 %v423, %v429
    %v433 = vadd.f32 %v424, %v429
    %v434 = vadd.f32 %v425, %v429
    %v435 = vadd.f32 %v426, %v429
    %v436 = vadd.f32 %v427, %v429
    %v437 = vadd.f32 %v428, %v429
    %v438 = vsel %vm252, %v430, -inf
    %v439 = vsel %vm252, %v431, -inf
    %v440 = vsel %vm252, %v432, -inf
    %v441 = vsel %vm252, %v433, -inf
    %v442 = vsel %vm252, %v434, -inf
    %v443 = vmax.f32 %v438, %v442
    %v444 = vsel %vm252, %v435, -inf
    %v445 = vmax.f32 %v439, %v444
    %v446 = vsel %vm252, %v436, -inf
    %v447 = vmax.f32 %v440, %v446
    %v448 = vsel %vm252, %v437, -inf
    %v449 = vmax.f32 %v441, %v448
    %v450 = vmax.f32 %v443, %v445
    %v451 = vmax.f32 %v447, %v449
    %v452 = vmax.f32 %v450, %v451
    %v453 = vsub.f32 %v430, %v452
    %v454 = vsub.f32 %v431, %v452
    %v455 = vsub.f32 %v432, %v452
    %v456 = vsub.f32 %v433, %v452
    %v457 = vsub.f32 %v434, %v452
    %v458 = vsub.f32 %v435, %v452
    %v459 = vsub.f32 %v436, %v452
    %v460 = vsub.f32 %v437, %v452
    %v461 = vmul.f32 %v453, 1.442695
    %v462 = vpow.pop %v461
    %v463 = vmul.f32 %v454, 1.442695
    %v464 = vpow.pop %v463
    %v465 = vmul.f32 %v455, 1.442695
    %v466 = vpow.pop %v465
    %v467 = vmul.f32 %v456, 1.442695
    %v468 = vpow.pop %v467
    %v469 = vmul.f32 %v457, 1.442695
    %v470 = vpow.pop %v469
    %v471 = vmul.f32 %v458, 1.442695
    %v472 = vpow.pop %v471
    %v473 = vmul.f32 %v459, 1.442695
    %v474 = vpow.pop %v473
    %v475 = vmul.f32 %v460, 1.442695
    %v476 = vpow.pop %v475
    %v477 = vsel %vm252, %v462, 0.0
    %v478 = vsel %vm252, %v464, 0.0
    %v479 = vadd.f32 %v477, %v478
    %v480 = vsel %vm252, %v466, 0.0
    %v481 = vadd.f32 %v479, %v480
    %v482 = vsel %vm252, %v468, 0.0
    %v483 = vadd.f32 %v481, %v482
    %v484 = vsel %vm252, %v470, 0.0
    %v485 = vadd.f32 %v483, %v484
    %v486 = vsel %vm252, %v472, 0.0
    %v487 = vadd.f32 %v485, %v486
    %v488 = vsel %vm252, %v474, 0.0
    %v489 = vadd.f32 %v487, %v488
    %v490 = vsel %vm252, %v476, 0.0
    %v491 = vadd.f32 %v489, %v490
    %v492 = vmul.f32 %v462, %v110
    %v493 = vmul.f32 %v464, %v114
    %v494 = vmul.f32 %v466, %v118
    %v495 = vmul.f32 %v468, %v122
    %v496 = vmul.f32 %v470, %v126
    %v497 = vmul.f32 %v472, %v130
    %v498 = vmul.f32 %v474, %v134
    %v499 = vmul.f32 %v476, %v138
    %v500 = vsel %vm252, %v492, 0.0
    %v501 = vsel %vm252, %v493, 0.0
    %v502 = vadd.f32 %v500, %v501
    %v503 = vsel %vm252, %v494, 0.0
    %v504 = vadd.f32 %v502, %v503
    %v505 = vsel %vm252, %v495, 0.0
    %v506 = vadd.f32 %v504, %v505
    %v507 = vsel %vm252, %v496, 0.0
    %v508 = vadd.f32 %v506, %v507
    %v509 = vsel %vm252, %v497, 0.0
    %v510 = vadd.f32 %v508, %v509
    %v511 = vsel %vm252, %v498, 0.0
    %v512 = vadd.f32 %v510, %v511
    %v513 = vsel %vm252, %v499, 0.0
    %v514 = vadd.f32 %v512, %v513
    %v515 = vrcp.pop %v491
    %v516 = vmul.f32 %v514, %v515
    %v517 = vsel %vm252, %v516, 0.0
    %v518 = vrot.slane %v517, 4
    %v519 = vadd.f32 %v517, %v518
    %v520 = vrot.slane %v519, 2
    %v521 = vadd.f32 %v519, %v520
    %v522 = vrot.slane %v521, 1
    %v523 = vadd.f32 %v521, %v522
    %v524 = vmul.f32 %v523, %v339
    %s525 = sld [smem:[#allocation2 + $0x100]]
    %s526 = sld [smem:[#allocation2 + $0x101]]
    %s527 = sld [smem:[#allocation2 + $0x102]]
    %s528 = sld [smem:[#allocation2 + $0x103]]
    %v529 = vstv %s525
    %v530 = vmul.f32 %v529, %v147
    %v531 = vmul.f32 %v529, %v148
    %v532 = vmul.f32 %v529, %v149
    %v533 = vmul.f32 %v529, %v150
    %v534 = vmul.f32 %v529, %v151
    %v535 = vmul.f32 %v529, %v152
    %v536 = vmul.f32 %v529, %v153
    %v537 = vmul.f32 %v529, %v154
    %v538 = vstv %s526
    %v539 = vmul.f32 %v538, %v48
    %v540 = vadd.f32 %v530, %v539
    %v541 = vadd.f32 %v531, %v539
    %v542 = vadd.f32 %v532, %v539
    %v543 = vadd.f32 %v533, %v539
    %v544 = vadd.f32 %v534, %v539
    %v545 = vadd.f32 %v535, %v539
    %v546 = vadd.f32 %v536, %v539
    %v547 = vadd.f32 %v537, %v539
    %v548 = vstv %s527
    %v549 = vmul.f32 %v548, %v73
    %v550 = vmul.f32 %v548, %v87
    %v551 = vmul.f32 %v548, %v95
    %v552 = vmul.f32 %v548, %v97
    %v553 = vmul.f32 %v548, %v80
    %v554 = vmul.f32 %v548, %v94
    %v555 = vmul.f32 %v548, %v96
    %v556 = vmul.f32 %v548, %v98
    %v565 = vlaneseq
    %v566 = vshrl.u32 %v565, 7
    %v567 = vsub.s32 0, %v566
    %v568 = vrot.slane %v549, %v567
    %v569 = vlaneseq
    %v570 = vshrl.u32 %v569, 7
    %v571 = vsub.s32 0, %v570
    %v572 = vrot.slane %v550, %v571
    %v573 = vlaneseq
    %v574 = vshrl.u32 %v573, 7
    %v575 = vsub.s32 0, %v574
    %v576 = vrot.slane %v551, %v575
    %v577 = vlaneseq
    %v578 = vshrl.u32 %v577, 7
    %v579 = vsub.s32 0, %v578
    %v580 = vrot.slane %v552, %v579
    %v581 = vlaneseq
    %v582 = vshrl.u32 %v581, 7
    %v583 = vsub.s32 0, %v582
    %v584 = vrot.slane %v553, %v583
    %v585 = vlaneseq
    %v586 = vshrl.u32 %v585, 7
    %v587 = vsub.s32 0, %v586
    %v588 = vrot.slane %v554, %v587
    %v589 = vlaneseq
    %v590 = vshrl.u32 %v589, 7
    %v591 = vsub.s32 0, %v590
    %v592 = vrot.slane %v555, %v591
    %v593 = vlaneseq
    %v594 = vshrl.u32 %v593, 7
    %v595 = vsub.s32 0, %v594
    %v596 = vrot.slane %v556, %v595
    %v605 = vadd.f32 %v540, %v568
    %v606 = vadd.f32 %v541, %v572
    %v607 = vadd.f32 %v542, %v576
    %v608 = vadd.f32 %v543, %v580
    %v609 = vadd.f32 %v544, %v584
    %v610 = vadd.f32 %v545, %v588
    %v611 = vadd.f32 %v546, %v592
    %v612 = vadd.f32 %v547, %v596
    %v613 = vstv %s528
    %v614 = vadd.f32 %v605, %v613
    %v615 = vadd.f32 %v606, %v613
    %v616 = vadd.f32 %v607, %v613
    %v617 = vadd.f32 %v608, %v613
    %v618 = vadd.f32 %v609, %v613
    %v619 = vadd.f32 %v610, %v613
    %v620 = vadd.f32 %v611, %v613
    %v621 = vadd.f32 %v612, %v613
    %v622 = vsel %vm252, %v614, -inf
    %v623 = vsel %vm252, %v615, -inf
    %v624 = vsel %vm252, %v616, -inf
    %v625 = vsel %vm252, %v617, -inf
    %v626 = vsel %vm252, %v618, -inf
    %v627 = vmax.f32 %v622, %v626
    %v628 = vsel %vm252, %v619, -inf
    %v629 = vmax.f32 %v623, %v628
    %v630 = vsel %vm252, %v620, -inf
    %v631 = vmax.f32 %v624, %v630
    %v632 = vsel %vm252, %v621, -inf
    %v633 = vmax.f32 %v625, %v632
    %v634 = vmax.f32 %v627, %v629
    %v635 = vmax.f32 %v631, %v633
    %v636 = vmax.f32 %v634, %v635
    %v637 = vsub.f32 %v614, %v636
    %v638 = vsub.f32 %v615, %v636
    %v639 = vsub.f32 %v616, %v636
    %v640 = vsub.f32 %v617, %v636
    %v641 = vsub.f32 %v618, %v636
    %v642 = vsub.f32 %v619, %v636
    %v643 = vsub.f32 %v620, %v636
    %v644 = vsub.f32 %v621, %v636
    %v645 = vmul.f32 %v637, 1.442695
    %v646 = vpow.pop %v645
    %v647 = vmul.f32 %v638, 1.442695
    %v648 = vpow.pop %v647
    %v649 = vmul.f32 %v639, 1.442695
    %v650 = vpow.pop %v649
    %v651 = vmul.f32 %v640, 1.442695
    %v652 = vpow.pop %v651
    %v653 = vmul.f32 %v641, 1.442695
    %v654 = vpow.pop %v653
    %v655 = vmul.f32 %v642, 1.442695
    %v656 = vpow.pop %v655
    %v657 = vmul.f32 %v643, 1.442695
    %v658 = vpow.pop %v657
    %v659 = vmul.f32 %v644, 1.442695
    %v660 = vpow.pop %v659
    %v661 = vsel %vm252, %v646, 0.0
    %v662 = vsel %vm252, %v648, 0.0
    %v663 = vadd.f32 %v661, %v662
    %v664 = vsel %vm252, %v650, 0.0
    %v665 = vadd.f32 %v663, %v664
    %v666 = vsel %vm252, %v652, 0.0
    %v667 = vadd.f32 %v665, %v666
    %v668 = vsel %vm252, %v654, 0.0
    %v669 = vadd.f32 %v667, %v668
    %v670 = vsel %vm252, %v656, 0.0
    %v671 = vadd.f32 %v669, %v670
    %v672 = vsel %vm252, %v658, 0.0
    %v673 = vadd.f32 %v671, %v672
    %v674 = vsel %vm252, %v660, 0.0
    %v675 = vadd.f32 %v673, %v674
    %v676 = vmul.f32 %v646, %v110
    %v677 = vmul.f32 %v648, %v114
    %v678 = vmul.f32 %v650, %v118
    %v679 = vmul.f32 %v652, %v122
    %v680 = vmul.f32 %v654, %v126
    %v681 = vmul.f32 %v656, %v130
    %v682 = vmul.f32 %v658, %v134
    %v683 = vmul.f32 %v660, %v138
    %v684 = vsel %vm252, %v676, 0.0
    %v685 = vsel %vm252, %v677, 0.0
    %v686 = vadd.f32 %v684, %v685
    %v687 = vsel %vm252, %v678, 0.0
    %v688 = vadd.f32 %v686, %v687
    %v689 = vsel %vm252, %v679, 0.0
    %v690 = vadd.f32 %v688, %v689
    %v691 = vsel %vm252, %v680, 0.0
    %v692 = vadd.f32 %v690, %v691
    %v693 = vsel %vm252, %v681, 0.0
    %v694 = vadd.f32 %v692, %v693
    %v695 = vsel %vm252, %v682, 0.0
    %v696 = vadd.f32 %v694, %v695
    %v697 = vsel %vm252, %v683, 0.0
    %v698 = vadd.f32 %v696, %v697
    %v699 = vrcp.pop %v675
    %v700 = vmul.f32 %v698, %v699
    %v701 = vsel %vm252, %v700, 0.0
    %v702 = vrot.slane %v701, 4
    %v703 = vadd.f32 %v701, %v702
    %v704 = vrot.slane %v703, 2
    %v705 = vadd.f32 %v703, %v704
    %v706 = vrot.slane %v705, 1
    %v707 = vadd.f32 %v705, %v706
    %v708 = vmul.f32 %v707, %v339
    %s709 = sld [smem:[#allocation2 + $0x180]]
    %s710 = sld [smem:[#allocation2 + $0x181]]
    %s711 = sld [smem:[#allocation2 + $0x182]]
    %s712 = sld [smem:[#allocation2 + $0x183]]
    %v713 = vstv %s709
    %v714 = vmul.f32 %v713, %v147
    %v715 = vmul.f32 %v713, %v148
    %v716 = vmul.f32 %v713, %v149
    %v717 = vmul.f32 %v713, %v150
    %v718 = vmul.f32 %v713, %v151
    %v719 = vmul.f32 %v713, %v152
    %v720 = vmul.f32 %v713, %v153
    %v721 = vmul.f32 %v713, %v154
    %v722 = vstv %s710
    %v723 = vmul.f32 %v722, %v48
    %v724 = vadd.f32 %v714, %v723
    %v725 = vadd.f32 %v715, %v723
    %v726 = vadd.f32 %v716, %v723
    %v727 = vadd.f32 %v717, %v723
    %v728 = vadd.f32 %v718, %v723
    %v729 = vadd.f32 %v719, %v723
    %v730 = vadd.f32 %v720, %v723
    %v731 = vadd.f32 %v721, %v723
    %v732 = vstv %s711
    %v733 = vmul.f32 %v732, %v73
    %v734 = vmul.f32 %v732, %v87
    %v735 = vmul.f32 %v732, %v95
    %v736 = vmul.f32 %v732, %v97
    %v737 = vmul.f32 %v732, %v80
    %v738 = vmul.f32 %v732, %v94
    %v739 = vmul.f32 %v732, %v96
    %v740 = vmul.f32 %v732, %v98
    %v749 = vlaneseq
    %v750 = vshrl.u32 %v749, 7
    %v751 = vsub.s32 0, %v750
    %v752 = vrot.slane %v733, %v751
    %v753 = vlaneseq
    %v754 = vshrl.u32 %v753, 7
    %v755 = vsub.s32 0, %v754
    %v756 = vrot.slane %v734, %v755
    %v757 = vlaneseq
    %v758 = vshrl.u32 %v757, 7
    %v759 = vsub.s32 0, %v758
    %v760 = vrot.slane %v735, %v759
    %v761 = vlaneseq
    %v762 = vshrl.u32 %v761, 7
    %v763 = vsub.s32 0, %v762
    %v764 = vrot.slane %v736, %v763
    %v765 = vlaneseq
    %v766 = vshrl.u32 %v765, 7
    %v767 = vsub.s32 0, %v766
    %v768 = vrot.slane %v737, %v767
    %v769 = vlaneseq
    %v770 = vshrl.u32 %v769, 7
    %v771 = vsub.s32 0, %v770
    %v772 = vrot.slane %v738, %v771
    %v773 = vlaneseq
    %v774 = vshrl.u32 %v773, 7
    %v775 = vsub.s32 0, %v774
    %v776 = vrot.slane %v739, %v775
    %v777 = vlaneseq
    %v778 = vshrl.u32 %v777, 7
    %v779 = vsub.s32 0, %v778
    %v780 = vrot.slane %v740, %v779
    %v789 = vadd.f32 %v724, %v752
    %v790 = vadd.f32 %v725, %v756
    %v791 = vadd.f32 %v726, %v760
    %v792 = vadd.f32 %v727, %v764
    %v793 = vadd.f32 %v728, %v768
    %v794 = vadd.f32 %v729, %v772
    %v795 = vadd.f32 %v730, %v776
    %v796 = vadd.f32 %v731, %v780
    %v797 = vstv %s712
    %v798 = vadd.f32 %v789, %v797
    %v799 = vadd.f32 %v790, %v797
    %v800 = vadd.f32 %v791, %v797
    %v801 = vadd.f32 %v792, %v797
    %v802 = vadd.f32 %v793, %v797
    %v803 = vadd.f32 %v794, %v797
    %v804 = vadd.f32 %v795, %v797
    %v805 = vadd.f32 %v796, %v797
    %v806 = vsel %vm252, %v798, -inf
    %v807 = vsel %vm252, %v799, -inf
    %v808 = vsel %vm252, %v800, -inf
    %v809 = vsel %vm252, %v801, -inf
    %v810 = vsel %vm252, %v802, -inf
    %v811 = vmax.f32 %v806, %v810
    %v812 = vsel %vm252, %v803, -inf
    %v813 = vmax.f32 %v807, %v812
    %v814 = vsel %vm252, %v804, -inf
    %v815 = vmax.f32 %v808, %v814
    %v816 = vsel %vm252, %v805, -inf
    %v817 = vmax.f32 %v809, %v816
    %v818 = vmax.f32 %v811, %v813
    %v819 = vmax.f32 %v815, %v817
    %v820 = vmax.f32 %v818, %v819
    %v821 = vsub.f32 %v798, %v820
    %v822 = vsub.f32 %v799, %v820
    %v823 = vsub.f32 %v800, %v820
    %v824 = vsub.f32 %v801, %v820
    %v825 = vsub.f32 %v802, %v820
    %v826 = vsub.f32 %v803, %v820
    %v827 = vsub.f32 %v804, %v820
    %v828 = vsub.f32 %v805, %v820
    %v829 = vmul.f32 %v821, 1.442695
    %v830 = vpow.pop %v829
    %v831 = vmul.f32 %v822, 1.442695
    %v832 = vpow.pop %v831
    %v833 = vmul.f32 %v823, 1.442695
    %v834 = vpow.pop %v833
    %v835 = vmul.f32 %v824, 1.442695
    %v836 = vpow.pop %v835
    %v837 = vmul.f32 %v825, 1.442695
    %v838 = vpow.pop %v837
    %v839 = vmul.f32 %v826, 1.442695
    %v840 = vpow.pop %v839
    %v841 = vmul.f32 %v827, 1.442695
    %v842 = vpow.pop %v841
    %v843 = vmul.f32 %v828, 1.442695
    %v844 = vpow.pop %v843
    %v845 = vsel %vm252, %v830, 0.0
    %v846 = vsel %vm252, %v832, 0.0
    %v847 = vadd.f32 %v845, %v846
    %v848 = vsel %vm252, %v834, 0.0
    %v849 = vadd.f32 %v847, %v848
    %v850 = vsel %vm252, %v836, 0.0
    %v851 = vadd.f32 %v849, %v850
    %v852 = vsel %vm252, %v838, 0.0
    %v853 = vadd.f32 %v851, %v852
    %v854 = vsel %vm252, %v840, 0.0
    %v855 = vadd.f32 %v853, %v854
    %v856 = vsel %vm252, %v842, 0.0
    %v857 = vadd.f32 %v855, %v856
    %v858 = vsel %vm252, %v844, 0.0
    %v859 = vadd.f32 %v857, %v858
    %v860 = vmul.f32 %v830, %v110
    %v861 = vmul.f32 %v832, %v114
    %v862 = vmul.f32 %v834, %v118
    %v863 = vmul.f32 %v836, %v122
    %v864 = vmul.f32 %v838, %v126
    %v865 = vmul.f32 %v840, %v130
    %v866 = vmul.f32 %v842, %v134
    %v867 = vmul.f32 %v844, %v138
    %v868 = vsel %vm252, %v860, 0.0
    %v869 = vsel %vm252, %v861, 0.0
    %v870 = vadd.f32 %v868, %v869
    %v871 = vsel %vm252, %v862, 0.0
    %v872 = vadd.f32 %v870, %v871
    %v873 = vsel %vm252, %v863, 0.0
    %v874 = vadd.f32 %v872, %v873
    %v875 = vsel %vm252, %v864, 0.0
    %v876 = vadd.f32 %v874, %v875
    %v877 = vsel %vm252, %v865, 0.0
    %v878 = vadd.f32 %v876, %v877
    %v879 = vsel %vm252, %v866, 0.0
    %v880 = vadd.f32 %v878, %v879
    %v881 = vsel %vm252, %v867, 0.0
    %v882 = vadd.f32 %v880, %v881
    %v883 = vrcp.pop %v859
    %v884 = vmul.f32 %v882, %v883
    %v885 = vsel %vm252, %v884, 0.0
    %v886 = vrot.slane %v885, 4
    %v887 = vadd.f32 %v885, %v886
    %v888 = vrot.slane %v887, 2
    %v889 = vadd.f32 %v887, %v888
    %v890 = vrot.slane %v889, 1
    %v891 = vadd.f32 %v889, %v890
    %v892 = vmul.f32 %v891, %v339
    %v893 = vld [vmem:[%s3] sm:$0xff]
    %v894 = vld [vmem:[%s3 + $0x8] sm:$0xff]
    %v895 = vld [vmem:[%s3 + $0x10] sm:$0xff]
    %v896 = vld [vmem:[%s3 + $0x18] sm:$0xff]
    %v897 = vld [vmem:[%s3 + $0x20] sm:$0xff]
    %v898 = vld [vmem:[%s3 + $0x28] sm:$0xff]
    %v899 = vld [vmem:[%s3 + $0x30] sm:$0xff]
    %v900 = vld [vmem:[%s3 + $0x38] sm:$0xff]
    %v901 = vld [vmem:[%s3 + $0x40] sm:$0xff]
    %v902 = vld [vmem:[%s3 + $0x48] sm:$0xff]
    %v903 = vld [vmem:[%s3 + $0x50] sm:$0xff]
    %v904 = vld [vmem:[%s3 + $0x58] sm:$0xff]
    %v905 = vld [vmem:[%s3 + $0x60] sm:$0xff]
    %v906 = vld [vmem:[%s3 + $0x68] sm:$0xff]
    %v907 = vld [vmem:[%s3 + $0x70] sm:$0xff]
    %v908 = vld [vmem:[%s3 + $0x78] sm:$0xff]
    %v909 = vld [vmem:[%s2] sm:$0xff]
    %v910 = vld [vmem:[%s2 + $0x8] sm:$0xff]
    %v911 = vld [vmem:[%s2 + $0x10] sm:$0xff]
    %v912 = vld [vmem:[%s2 + $0x18] sm:$0xff]
    %v913 = vld [vmem:[%s2 + $0x20] sm:$0xff]
    %v914 = vld [vmem:[%s2 + $0x28] sm:$0xff]
    %v915 = vld [vmem:[%s2 + $0x30] sm:$0xff]
    %v916 = vld [vmem:[%s2 + $0x38] sm:$0xff]
    %v917 = vld [vmem:[%s2 + $0x40] sm:$0xff]
    %v918 = vld [vmem:[%s2 + $0x48] sm:$0xff]
    %v919 = vld [vmem:[%s2 + $0x50] sm:$0xff]
    %v920 = vld [vmem:[%s2 + $0x58] sm:$0xff]
    %v921 = vld [vmem:[%s2 + $0x60] sm:$0xff]
    %v922 = vld [vmem:[%s2 + $0x68] sm:$0xff]
    %v923 = vld [vmem:[%s2 + $0x70] sm:$0xff]
    %v924 = vld [vmem:[%s2 + $0x78] sm:$0xff]
    %926 = vset.pattern.permute.xlu0 0
    %927 = vperm.xlu0 %926, %v909
    %v928 = vpop.permute.xlu0 %927
    %931 = vset.pattern.permute.xlu0 0
    %932 = vperm.xlu0 %931, %v910
    %v933 = vpop.permute.xlu0 %932
    %936 = vset.pattern.permute.xlu0 0
    %937 = vperm.xlu0 %936, %v911
    %v938 = vpop.permute.xlu0 %937
    %941 = vset.pattern.permute.xlu0 0
    %942 = vperm.xlu0 %941, %v912
    %v943 = vpop.permute.xlu0 %942
    %946 = vset.pattern.permute.xlu0 0
    %947 = vperm.xlu0 %946, %v913
    %v948 = vpop.permute.xlu0 %947
    %951 = vset.pattern.permute.xlu0 0
    %952 = vperm.xlu0 %951, %v914
    %v953 = vpop.permute.xlu0 %952
    %956 = vset.pattern.permute.xlu0 0
    %957 = vperm.xlu0 %956, %v915
    %v958 = vpop.permute.xlu0 %957
    %961 = vset.pattern.permute.xlu0 0
    %962 = vperm.xlu0 %961, %v916
    %v963 = vpop.permute.xlu0 %962
    %966 = vset.pattern.permute.xlu0 0
    %967 = vperm.xlu0 %966, %v917
    %v968 = vpop.permute.xlu0 %967
    %971 = vset.pattern.permute.xlu0 0
    %972 = vperm.xlu0 %971, %v918
    %v973 = vpop.permute.xlu0 %972
    %976 = vset.pattern.permute.xlu0 0
    %977 = vperm.xlu0 %976, %v919
    %v978 = vpop.permute.xlu0 %977
    %981 = vset.pattern.permute.xlu0 0
    %982 = vperm.xlu0 %981, %v920
    %v983 = vpop.permute.xlu0 %982
    %986 = vset.pattern.permute.xlu0 0
    %987 = vperm.xlu0 %986, %v921
    %v988 = vpop.permute.xlu0 %987
    %991 = vset.pattern.permute.xlu0 0
    %992 = vperm.xlu0 %991, %v922
    %v993 = vpop.permute.xlu0 %992
    %996 = vset.pattern.permute.xlu0 0
    %997 = vperm.xlu0 %996, %v923
    %v998 = vpop.permute.xlu0 %997
    %1001 = vset.pattern.permute.xlu0 0
    %1002 = vperm.xlu0 %1001, %v924
    %v1003 = vpop.permute.xlu0 %1002
    %v1005 = vmul.f32 %v928, %v340
    %v1006 = vmul.f32 %v933, %v340
    %v1007 = vmul.f32 %v938, %v340
    %v1008 = vmul.f32 %v943, %v340
    %v1009 = vmul.f32 %v948, %v340
    %v1010 = vmul.f32 %v953, %v340
    %v1011 = vmul.f32 %v958, %v340
    %v1012 = vmul.f32 %v963, %v340
    %v1013 = vmul.f32 %v968, %v340
    %v1014 = vmul.f32 %v973, %v340
    %v1015 = vmul.f32 %v978, %v340
    %v1016 = vmul.f32 %v983, %v340
    %v1017 = vmul.f32 %v988, %v340
    %v1018 = vmul.f32 %v993, %v340
    %v1019 = vmul.f32 %v998, %v340
    %v1020 = vmul.f32 %v1003, %v340
    %1022 = vset.pattern.permute.xlu0 0
    %1023 = vperm.xlu0 %1022, %v893
    %v1024 = vpop.permute.xlu0 %1023
    %1027 = vset.pattern.permute.xlu0 0
    %1028 = vperm.xlu0 %1027, %v894
    %v1029 = vpop.permute.xlu0 %1028
    %1032 = vset.pattern.permute.xlu0 0
    %1033 = vperm.xlu0 %1032, %v895
    %v1034 = vpop.permute.xlu0 %1033
    %1037 = vset.pattern.permute.xlu0 0
    %1038 = vperm.xlu0 %1037, %v896
    %v1039 = vpop.permute.xlu0 %1038
    %1042 = vset.pattern.permute.xlu0 0
    %1043 = vperm.xlu0 %1042, %v897
    %v1044 = vpop.permute.xlu0 %1043
    %1047 = vset.pattern.permute.xlu0 0
    %1048 = vperm.xlu0 %1047, %v898
    %v1049 = vpop.permute.xlu0 %1048
    %1052 = vset.pattern.permute.xlu0 0
    %1053 = vperm.xlu0 %1052, %v899
    %v1054 = vpop.permute.xlu0 %1053
    %1057 = vset.pattern.permute.xlu0 0
    %1058 = vperm.xlu0 %1057, %v900
    %v1059 = vpop.permute.xlu0 %1058
    %1062 = vset.pattern.permute.xlu0 0
    %1063 = vperm.xlu0 %1062, %v901
    %v1064 = vpop.permute.xlu0 %1063
    %1067 = vset.pattern.permute.xlu0 0
    %1068 = vperm.xlu0 %1067, %v902
    %v1069 = vpop.permute.xlu0 %1068
    %1072 = vset.pattern.permute.xlu0 0
    %1073 = vperm.xlu0 %1072, %v903
    %v1074 = vpop.permute.xlu0 %1073
    %1077 = vset.pattern.permute.xlu0 0
    %1078 = vperm.xlu0 %1077, %v904
    %v1079 = vpop.permute.xlu0 %1078
    %1082 = vset.pattern.permute.xlu0 0
    %1083 = vperm.xlu0 %1082, %v905
    %v1084 = vpop.permute.xlu0 %1083
    %1087 = vset.pattern.permute.xlu0 0
    %1088 = vperm.xlu0 %1087, %v906
    %v1089 = vpop.permute.xlu0 %1088
    %1092 = vset.pattern.permute.xlu0 0
    %1093 = vperm.xlu0 %1092, %v907
    %v1094 = vpop.permute.xlu0 %1093
    %1097 = vset.pattern.permute.xlu0 0
    %1098 = vperm.xlu0 %1097, %v908
    %v1099 = vpop.permute.xlu0 %1098
    %v1101 = vadd.f32 %v1024, %v1005
    %v1102 = vadd.f32 %v1029, %v1006
    %v1103 = vadd.f32 %v1034, %v1007
    %v1104 = vadd.f32 %v1039, %v1008
    %v1105 = vadd.f32 %v1044, %v1009
    %v1106 = vadd.f32 %v1049, %v1010
    %v1107 = vadd.f32 %v1054, %v1011
    %v1108 = vadd.f32 %v1059, %v1012
    %v1109 = vadd.f32 %v1064, %v1013
    %v1110 = vadd.f32 %v1069, %v1014
    %v1111 = vadd.f32 %v1074, %v1015
    %v1112 = vadd.f32 %v1079, %v1016
    %v1113 = vadd.f32 %v1084, %v1017
    %v1114 = vadd.f32 %v1089, %v1018
    %v1115 = vadd.f32 %v1094, %v1019
    %v1116 = vadd.f32 %v1099, %v1020
    %s1117 = scalar_lea.vmem %s2, 128
    %v1118 = vld [vmem:[%s1117] sm:$0xff]
    %v1119 = vld [vmem:[%s1117 + $0x8] sm:$0xff]
    %v1120 = vld [vmem:[%s1117 + $0x10] sm:$0xff]
    %v1121 = vld [vmem:[%s1117 + $0x18] sm:$0xff]
    %v1122 = vld [vmem:[%s1117 + $0x20] sm:$0xff]
    %v1123 = vld [vmem:[%s1117 + $0x28] sm:$0xff]
    %v1124 = vld [vmem:[%s1117 + $0x30] sm:$0xff]
    %v1125 = vld [vmem:[%s1117 + $0x38] sm:$0xff]
    %v1126 = vld [vmem:[%s1117 + $0x40] sm:$0xff]
    %v1127 = vld [vmem:[%s1117 + $0x48] sm:$0xff]
    %v1128 = vld [vmem:[%s1117 + $0x50] sm:$0xff]
    %v1129 = vld [vmem:[%s1117 + $0x58] sm:$0xff]
    %v1130 = vld [vmem:[%s1117 + $0x60] sm:$0xff]
    %v1131 = vld [vmem:[%s1117 + $0x68] sm:$0xff]
    %v1132 = vld [vmem:[%s1117 + $0x70] sm:$0xff]
    %v1133 = vld [vmem:[%s1117 + $0x78] sm:$0xff]
    %1135 = vset.pattern.permute.xlu0 0
    %1136 = vperm.xlu0 %1135, %v1118
    %v1137 = vpop.permute.xlu0 %1136
    %1140 = vset.pattern.permute.xlu0 0
    %1141 = vperm.xlu0 %1140, %v1119
    %v1142 = vpop.permute.xlu0 %1141
    %1145 = vset.pattern.permute.xlu0 0
    %1146 = vperm.xlu0 %1145, %v1120
    %v1147 = vpop.permute.xlu0 %1146
    %1150 = vset.pattern.permute.xlu0 0
    %1151 = vperm.xlu0 %1150, %v1121
    %v1152 = vpop.permute.xlu0 %1151
    %1155 = vset.pattern.permute.xlu0 0
    %1156 = vperm.xlu0 %1155, %v1122
    %v1157 = vpop.permute.xlu0 %1156
    %1160 = vset.pattern.permute.xlu0 0
    %1161 = vperm.xlu0 %1160, %v1123
    %v1162 = vpop.permute.xlu0 %1161
    %1165 = vset.pattern.permute.xlu0 0
    %1166 = vperm.xlu0 %1165, %v1124
    %v1167 = vpop.permute.xlu0 %1166
    %1170 = vset.pattern.permute.xlu0 0
    %1171 = vperm.xlu0 %1170, %v1125
    %v1172 = vpop.permute.xlu0 %1171
    %1175 = vset.pattern.permute.xlu0 0
    %1176 = vperm.xlu0 %1175, %v1126
    %v1177 = vpop.permute.xlu0 %1176
    %1180 = vset.pattern.permute.xlu0 0
    %1181 = vperm.xlu0 %1180, %v1127
    %v1182 = vpop.permute.xlu0 %1181
    %1185 = vset.pattern.permute.xlu0 0
    %1186 = vperm.xlu0 %1185, %v1128
    %v1187 = vpop.permute.xlu0 %1186
    %1190 = vset.pattern.permute.xlu0 0
    %1191 = vperm.xlu0 %1190, %v1129
    %v1192 = vpop.permute.xlu0 %1191
    %1195 = vset.pattern.permute.xlu0 0
    %1196 = vperm.xlu0 %1195, %v1130
    %v1197 = vpop.permute.xlu0 %1196
    %1200 = vset.pattern.permute.xlu0 0
    %1201 = vperm.xlu0 %1200, %v1131
    %v1202 = vpop.permute.xlu0 %1201
    %1205 = vset.pattern.permute.xlu0 0
    %1206 = vperm.xlu0 %1205, %v1132
    %v1207 = vpop.permute.xlu0 %1206
    %1210 = vset.pattern.permute.xlu0 0
    %1211 = vperm.xlu0 %1210, %v1133
    %v1212 = vpop.permute.xlu0 %1211
    %v1214 = vmul.f32 %v1137, %v524
    %v1215 = vmul.f32 %v1142, %v524
    %v1216 = vmul.f32 %v1147, %v524
    %v1217 = vmul.f32 %v1152, %v524
    %v1218 = vmul.f32 %v1157, %v524
    %v1219 = vmul.f32 %v1162, %v524
    %v1220 = vmul.f32 %v1167, %v524
    %v1221 = vmul.f32 %v1172, %v524
    %v1222 = vmul.f32 %v1177, %v524
    %v1223 = vmul.f32 %v1182, %v524
    %v1224 = vmul.f32 %v1187, %v524
    %v1225 = vmul.f32 %v1192, %v524
    %v1226 = vmul.f32 %v1197, %v524
    %v1227 = vmul.f32 %v1202, %v524
    %v1228 = vmul.f32 %v1207, %v524
    %v1229 = vmul.f32 %v1212, %v524
    %v1230 = vadd.f32 %v1101, %v1214
    %v1231 = vadd.f32 %v1102, %v1215
    %v1232 = vadd.f32 %v1103, %v1216
    %v1233 = vadd.f32 %v1104, %v1217
    %v1234 = vadd.f32 %v1105, %v1218
    %v1235 = vadd.f32 %v1106, %v1219
    %v1236 = vadd.f32 %v1107, %v1220
    %v1237 = vadd.f32 %v1108, %v1221
    %v1238 = vadd.f32 %v1109, %v1222
    %v1239 = vadd.f32 %v1110, %v1223
    %v1240 = vadd.f32 %v1111, %v1224
    %v1241 = vadd.f32 %v1112, %v1225
    %v1242 = vadd.f32 %v1113, %v1226
    %v1243 = vadd.f32 %v1114, %v1227
    %v1244 = vadd.f32 %v1115, %v1228
    %v1245 = vadd.f32 %v1116, %v1229
    %s1246 = scalar_lea.vmem %s2, 256
    %v1247 = vld [vmem:[%s1246] sm:$0xff]
    %v1248 = vld [vmem:[%s1246 + $0x8] sm:$0xff]
    %v1249 = vld [vmem:[%s1246 + $0x10] sm:$0xff]
    %v1250 = vld [vmem:[%s1246 + $0x18] sm:$0xff]
    %v1251 = vld [vmem:[%s1246 + $0x20] sm:$0xff]
    %v1252 = vld [vmem:[%s1246 + $0x28] sm:$0xff]
    %v1253 = vld [vmem:[%s1246 + $0x30] sm:$0xff]
    %v1254 = vld [vmem:[%s1246 + $0x38] sm:$0xff]
    %v1255 = vld [vmem:[%s1246 + $0x40] sm:$0xff]
    %v1256 = vld [vmem:[%s1246 + $0x48] sm:$0xff]
    %v1257 = vld [vmem:[%s1246 + $0x50] sm:$0xff]
    %v1258 = vld [vmem:[%s1246 + $0x58] sm:$0xff]
    %v1259 = vld [vmem:[%s1246 + $0x60] sm:$0xff]
    %v1260 = vld [vmem:[%s1246 + $0x68] sm:$0xff]
    %v1261 = vld [vmem:[%s1246 + $0x70] sm:$0xff]
    %v1262 = vld [vmem:[%s1246 + $0x78] sm:$0xff]
    %1264 = vset.pattern.permute.xlu0 0
    %1265 = vperm.xlu0 %1264, %v1247
    %v1266 = vpop.permute.xlu0 %1265
    %1269 = vset.pattern.permute.xlu0 0
    %1270 = vperm.xlu0 %1269, %v1248
    %v1271 = vpop.permute.xlu0 %1270
    %1274 = vset.pattern.permute.xlu0 0
    %1275 = vperm.xlu0 %1274, %v1249
    %v1276 = vpop.permute.xlu0 %1275
    %1279 = vset.pattern.permute.xlu0 0
    %1280 = vperm.xlu0 %1279, %v1250
    %v1281 = vpop.permute.xlu0 %1280
    %1284 = vset.pattern.permute.xlu0 0
    %1285 = vperm.xlu0 %1284, %v1251
    %v1286 = vpop.permute.xlu0 %1285
    %1289 = vset.pattern.permute.xlu0 0
    %1290 = vperm.xlu0 %1289, %v1252
    %v1291 = vpop.permute.xlu0 %1290
    %1294 = vset.pattern.permute.xlu0 0
    %1295 = vperm.xlu0 %1294, %v1253
    %v1296 = vpop.permute.xlu0 %1295
    %1299 = vset.pattern.permute.xlu0 0
    %1300 = vperm.xlu0 %1299, %v1254
    %v1301 = vpop.permute.xlu0 %1300
    %1304 = vset.pattern.permute.xlu0 0
    %1305 = vperm.xlu0 %1304, %v1255
    %v1306 = vpop.permute.xlu0 %1305
    %1309 = vset.pattern.permute.xlu0 0
    %1310 = vperm.xlu0 %1309, %v1256
    %v1311 = vpop.permute.xlu0 %1310
    %1314 = vset.pattern.permute.xlu0 0
    %1315 = vperm.xlu0 %1314, %v1257
    %v1316 = vpop.permute.xlu0 %1315
    %1319 = vset.pattern.permute.xlu0 0
    %1320 = vperm.xlu0 %1319, %v1258
    %v1321 = vpop.permute.xlu0 %1320
    %1324 = vset.pattern.permute.xlu0 0
    %1325 = vperm.xlu0 %1324, %v1259
    %v1326 = vpop.permute.xlu0 %1325
    %1329 = vset.pattern.permute.xlu0 0
    %1330 = vperm.xlu0 %1329, %v1260
    %v1331 = vpop.permute.xlu0 %1330
    %1334 = vset.pattern.permute.xlu0 0
    %1335 = vperm.xlu0 %1334, %v1261
    %v1336 = vpop.permute.xlu0 %1335
    %1339 = vset.pattern.permute.xlu0 0
    %1340 = vperm.xlu0 %1339, %v1262
    %v1341 = vpop.permute.xlu0 %1340
    %v1343 = vmul.f32 %v1266, %v708
    %v1344 = vmul.f32 %v1271, %v708
    %v1345 = vmul.f32 %v1276, %v708
    %v1346 = vmul.f32 %v1281, %v708
    %v1347 = vmul.f32 %v1286, %v708
    %v1348 = vmul.f32 %v1291, %v708
    %v1349 = vmul.f32 %v1296, %v708
    %v1350 = vmul.f32 %v1301, %v708
    %v1351 = vmul.f32 %v1306, %v708
    %v1352 = vmul.f32 %v1311, %v708
    %v1353 = vmul.f32 %v1316, %v708
    %v1354 = vmul.f32 %v1321, %v708
    %v1355 = vmul.f32 %v1326, %v708
    %v1356 = vmul.f32 %v1331, %v708
    %v1357 = vmul.f32 %v1336, %v708
    %v1358 = vmul.f32 %v1341, %v708
    %v1359 = vadd.f32 %v1230, %v1343
    %v1360 = vadd.f32 %v1231, %v1344
    %v1361 = vadd.f32 %v1232, %v1345
    %v1362 = vadd.f32 %v1233, %v1346
    %v1363 = vadd.f32 %v1234, %v1347
    %v1364 = vadd.f32 %v1235, %v1348
    %v1365 = vadd.f32 %v1236, %v1349
    %v1366 = vadd.f32 %v1237, %v1350
    %v1367 = vadd.f32 %v1238, %v1351
    %v1368 = vadd.f32 %v1239, %v1352
    %v1369 = vadd.f32 %v1240, %v1353
    %v1370 = vadd.f32 %v1241, %v1354
    %v1371 = vadd.f32 %v1242, %v1355
    %v1372 = vadd.f32 %v1243, %v1356
    %v1373 = vadd.f32 %v1244, %v1357
    %v1374 = vadd.f32 %v1245, %v1358
    %s1375 = scalar_lea.vmem %s2, 384
    %v1376 = vld [vmem:[%s1375] sm:$0xff]
    %v1377 = vld [vmem:[%s1375 + $0x8] sm:$0xff]
    %v1378 = vld [vmem:[%s1375 + $0x10] sm:$0xff]
    %v1379 = vld [vmem:[%s1375 + $0x18] sm:$0xff]
    %v1380 = vld [vmem:[%s1375 + $0x20] sm:$0xff]
    %v1381 = vld [vmem:[%s1375 + $0x28] sm:$0xff]
    %v1382 = vld [vmem:[%s1375 + $0x30] sm:$0xff]
    %v1383 = vld [vmem:[%s1375 + $0x38] sm:$0xff]
    %v1384 = vld [vmem:[%s1375 + $0x40] sm:$0xff]
    %v1385 = vld [vmem:[%s1375 + $0x48] sm:$0xff]
    %v1386 = vld [vmem:[%s1375 + $0x50] sm:$0xff]
    %v1387 = vld [vmem:[%s1375 + $0x58] sm:$0xff]
    %v1388 = vld [vmem:[%s1375 + $0x60] sm:$0xff]
    %v1389 = vld [vmem:[%s1375 + $0x68] sm:$0xff]
    %v1390 = vld [vmem:[%s1375 + $0x70] sm:$0xff]
    %v1391 = vld [vmem:[%s1375 + $0x78] sm:$0xff]
    %1393 = vset.pattern.permute.xlu0 0
    %1394 = vperm.xlu0 %1393, %v1376
    %v1395 = vpop.permute.xlu0 %1394
    %1398 = vset.pattern.permute.xlu0 0
    %1399 = vperm.xlu0 %1398, %v1377
    %v1400 = vpop.permute.xlu0 %1399
    %1403 = vset.pattern.permute.xlu0 0
    %1404 = vperm.xlu0 %1403, %v1378
    %v1405 = vpop.permute.xlu0 %1404
    %1408 = vset.pattern.permute.xlu0 0
    %1409 = vperm.xlu0 %1408, %v1379
    %v1410 = vpop.permute.xlu0 %1409
    %1413 = vset.pattern.permute.xlu0 0
    %1414 = vperm.xlu0 %1413, %v1380
    %v1415 = vpop.permute.xlu0 %1414
    %1418 = vset.pattern.permute.xlu0 0
    %1419 = vperm.xlu0 %1418, %v1381
    %v1420 = vpop.permute.xlu0 %1419
    %1423 = vset.pattern.permute.xlu0 0
    %1424 = vperm.xlu0 %1423, %v1382
    %v1425 = vpop.permute.xlu0 %1424
    %1428 = vset.pattern.permute.xlu0 0
    %1429 = vperm.xlu0 %1428, %v1383
    %v1430 = vpop.permute.xlu0 %1429
    %1433 = vset.pattern.permute.xlu0 0
    %1434 = vperm.xlu0 %1433, %v1384
    %v1435 = vpop.permute.xlu0 %1434
    %1438 = vset.pattern.permute.xlu0 0
    %1439 = vperm.xlu0 %1438, %v1385
    %v1440 = vpop.permute.xlu0 %1439
    %1443 = vset.pattern.permute.xlu0 0
    %1444 = vperm.xlu0 %1443, %v1386
    %v1445 = vpop.permute.xlu0 %1444
    %1448 = vset.pattern.permute.xlu0 0
    %1449 = vperm.xlu0 %1448, %v1387
    %v1450 = vpop.permute.xlu0 %1449
    %1453 = vset.pattern.permute.xlu0 0
    %1454 = vperm.xlu0 %1453, %v1388
    %v1455 = vpop.permute.xlu0 %1454
    %1458 = vset.pattern.permute.xlu0 0
    %1459 = vperm.xlu0 %1458, %v1389
    %v1460 = vpop.permute.xlu0 %1459
    %1463 = vset.pattern.permute.xlu0 0
    %1464 = vperm.xlu0 %1463, %v1390
    %v1465 = vpop.permute.xlu0 %1464
    %1468 = vset.pattern.permute.xlu0 0
    %1469 = vperm.xlu0 %1468, %v1391
    %v1470 = vpop.permute.xlu0 %1469
    %v1472 = vmul.f32 %v1395, %v892
    %v1473 = vmul.f32 %v1400, %v892
    %v1474 = vmul.f32 %v1405, %v892
    %v1475 = vmul.f32 %v1410, %v892
    %v1476 = vmul.f32 %v1415, %v892
    %v1477 = vmul.f32 %v1420, %v892
    %v1478 = vmul.f32 %v1425, %v892
    %v1479 = vmul.f32 %v1430, %v892
    %v1480 = vmul.f32 %v1435, %v892
    %v1481 = vmul.f32 %v1440, %v892
    %v1482 = vmul.f32 %v1445, %v892
    %v1483 = vmul.f32 %v1450, %v892
    %v1484 = vmul.f32 %v1455, %v892
    %v1485 = vmul.f32 %v1460, %v892
    %v1486 = vmul.f32 %v1465, %v892
    %v1487 = vmul.f32 %v1470, %v892
    %v1488 = vadd.f32 %v1359, %v1472
    %v1489 = vadd.f32 %v1360, %v1473
    %v1490 = vadd.f32 %v1361, %v1474
    %v1491 = vadd.f32 %v1362, %v1475
    %v1492 = vadd.f32 %v1363, %v1476
    %v1493 = vadd.f32 %v1364, %v1477
    %v1494 = vadd.f32 %v1365, %v1478
    %v1495 = vadd.f32 %v1366, %v1479
    %v1496 = vadd.f32 %v1367, %v1480
    %v1497 = vadd.f32 %v1368, %v1481
    %v1498 = vadd.f32 %v1369, %v1482
    %v1499 = vadd.f32 %v1370, %v1483
    %v1500 = vadd.f32 %v1371, %v1484
    %v1501 = vadd.f32 %v1372, %v1485
    %v1502 = vadd.f32 %v1373, %v1486
    %v1503 = vadd.f32 %v1374, %v1487
    %v1504 = vld [vmem:[%s4] sm:$0xff]
    %v1505 = vld [vmem:[%s4 + $0x8] sm:$0xff]
    %v1506 = vld [vmem:[%s4 + $0x10] sm:$0xff]
    %v1507 = vld [vmem:[%s4 + $0x18] sm:$0xff]
    %v1508 = vld [vmem:[%s4 + $0x20] sm:$0xff]
    %v1509 = vld [vmem:[%s4 + $0x28] sm:$0xff]
    %v1510 = vld [vmem:[%s4 + $0x30] sm:$0xff]
    %v1511 = vld [vmem:[%s4 + $0x38] sm:$0xff]
    %v1512 = vld [vmem:[%s5] sm:$0xff]
    %v1513 = vld [vmem:[%s5 + $0x8] sm:$0xff]
    %v1514 = vld [vmem:[%s5 + $0x10] sm:$0xff]
    %v1515 = vld [vmem:[%s5 + $0x18] sm:$0xff]
    %v1516 = vld [vmem:[%s5 + $0x20] sm:$0xff]
    %v1517 = vld [vmem:[%s5 + $0x28] sm:$0xff]
    %v1518 = vld [vmem:[%s5 + $0x30] sm:$0xff]
    %v1519 = vld [vmem:[%s5 + $0x38] sm:$0xff]
    %1521 = vset.pattern.permute.xlu0 0
    %1522 = vperm.xlu0 %1521, %v1512
    %v1523 = vpop.permute.xlu0 %1522
    %1526 = vset.pattern.permute.xlu0 0
    %1527 = vperm.xlu0 %1526, %v1513
    %v1528 = vpop.permute.xlu0 %1527
    %1531 = vset.pattern.permute.xlu0 0
    %1532 = vperm.xlu0 %1531, %v1514
    %v1533 = vpop.permute.xlu0 %1532
    %1536 = vset.pattern.permute.xlu0 0
    %1537 = vperm.xlu0 %1536, %v1515
    %v1538 = vpop.permute.xlu0 %1537
    %1541 = vset.pattern.permute.xlu0 0
    %1542 = vperm.xlu0 %1541, %v1516
    %v1543 = vpop.permute.xlu0 %1542
    %1546 = vset.pattern.permute.xlu0 0
    %1547 = vperm.xlu0 %1546, %v1517
    %v1548 = vpop.permute.xlu0 %1547
    %1551 = vset.pattern.permute.xlu0 0
    %1552 = vperm.xlu0 %1551, %v1518
    %v1553 = vpop.permute.xlu0 %1552
    %1556 = vset.pattern.permute.xlu0 0
    %1557 = vperm.xlu0 %1556, %v1519
    %v1558 = vpop.permute.xlu0 %1557
    %1560 = vmatprep.subr.mxu0 0.0
    %1561 = vmatpush1.msra.mxu0 %v1488
    %1562 = vmatprep.subr.mxu0 0.0
    %1563 = vmatpush1.msra.mxu0 %v1489
    %1564 = vmatprep.subr.mxu0 0.0
    %1565 = vmatpush1.msra.mxu0 %v1490
    %1566 = vmatprep.subr.mxu0 0.0
    %1567 = vmatpush1.msra.mxu0 %v1491
    %1568 = vmatprep.subr.mxu0 0.0
    %1569 = vmatpush1.msra.mxu0 %v1492
    %1570 = vmatprep.subr.mxu0 0.0
    %1571 = vmatpush1.msra.mxu0 %v1493
    %1572 = vmatprep.subr.mxu0 0.0
    %1573 = vmatpush1.msra.mxu0 %v1494
    %1574 = vmatprep.subr.mxu0 0.0
    %1575 = vmatpush1.msra.mxu0 %v1495
    %1576 = vmatprep.subr.mxu0 0.0
    %1577 = vmatpush1.msra.mxu0 %v1496
    %1578 = vmatprep.subr.mxu0 0.0
    %1579 = vmatpush1.msra.mxu0 %v1497
    %1580 = vmatprep.subr.mxu0 0.0
    %1581 = vmatpush1.msra.mxu0 %v1498
    %1582 = vmatprep.subr.mxu0 0.0
    %1583 = vmatpush1.msra.mxu0 %v1499
    %1584 = vmatprep.subr.mxu0 0.0
    %1585 = vmatpush1.msra.mxu0 %v1500
    %1586 = vmatprep.subr.mxu0 0.0
    %1587 = vmatpush1.msra.mxu0 %v1501
    %1588 = vmatprep.subr.mxu0 0.0
    %1589 = vmatpush1.msra.mxu0 %v1502
    %1590 = vmatprep.subr.mxu0 0.0
    %1591 = vmatpush1.msra.mxu0 %v1503
    %1592 = vmatprep.subr.mxu0 0.0
    %1593 = vmatpush1.msra.mxu0 0.0
    %1594 = vmatprep.subr.mxu0 0.0
    %1595 = vmatpush1.msra.mxu0 0.0
    %1596 = vmatprep.subr.mxu0 0.0
    %1597 = vmatpush1.msra.mxu0 0.0
    %1598 = vmatprep.subr.mxu0 0.0
    %1599 = vmatpush1.msra.mxu0 0.0
    %1600 = vmatprep.subr.mxu0 0.0
    %1601 = vmatpush1.msra.mxu0 0.0
    %1602 = vmatprep.subr.mxu0 0.0
    %1603 = vmatpush1.msra.mxu0 0.0
    %1604 = vmatprep.subr.mxu0 0.0
    %1605 = vmatpush1.msra.mxu0 0.0
    %1606 = vmatprep.subr.mxu0 0.0
    %1607 = vmatpush1.msra.mxu0 0.0
    %1608 = vmatprep.subr.mxu0 0.0
    %1609 = vmatpush1.msra.mxu0 0.0
    %1610 = vmatprep.subr.mxu0 0.0
    %1611 = vmatpush1.msra.mxu0 0.0
    %1612 = vmatprep.subr.mxu0 0.0
    %1613 = vmatpush1.msra.mxu0 0.0
    %1614 = vmatprep.subr.mxu0 0.0
    %1615 = vmatpush1.msra.mxu0 0.0
    %1616 = vmatprep.subr.mxu0 0.0
    %1617 = vmatpush1.msra.mxu0 0.0
    %1618 = vmatprep.subr.mxu0 0.0
    %1619 = vmatpush1.msra.mxu0 0.0
    %1620 = vmatprep.subr.mxu0 0.0
    %1621 = vmatpush1.msra.mxu0 0.0
    %1622 = vmatprep.subr.mxu0 0.0
    %1623 = vmatpush1.msra.mxu0 0.0
    %1624 = vmatprep.mubr.f32.mxu0 0.0
    %1625 = vmatmul.mubr.f32.gmra.mrb[0].mxu0 %v1504
    %v1626 = vpop.f32.mrb[0].mxu0
    %v1627 = vadd.f32 %v1523, %v1626
    %v1628 = vpop.f32.mrb[0].mxu0
    %1629 = vmatprep.mubr.f32.mxu0 0.0
    %1630 = vmatmul.mubr.f32.gmra.mrb[0].mxu0 %v1505
    %v1631 = vpop.f32.mrb[0].mxu0
    %v1632 = vadd.f32 %v1528, %v1631
    %v1633 = vpop.f32.mrb[0].mxu0
    %1634 = vmatprep.mubr.f32.mxu0 0.0
    %1635 = vmatmul.mubr.f32.gmra.mrb[0].mxu0 %v1506
    %v1636 = vpop.f32.mrb[0].mxu0
    %v1637 = vadd.f32 %v1533, %v1636
    %v1638 = vpop.f32.mrb[0].mxu0
    %1639 = vmatprep.mubr.f32.mxu0 0.0
    %1640 = vmatmul.mubr.f32.gmra.mrb[0].mxu0 %v1507
    %v1641 = vpop.f32.mrb[0].mxu0
    %v1642 = vadd.f32 %v1538, %v1641
    %v1643 = vpop.f32.mrb[0].mxu0
    %1644 = vmatprep.mubr.f32.mxu0 0.0
    %1645 = vmatmul.mubr.f32.gmra.mrb[0].mxu0 %v1508
    %v1646 = vpop.f32.mrb[0].mxu0
    %v1647 = vadd.f32 %v1543, %v1646
    %v1648 = vpop.f32.mrb[0].mxu0
    %1649 = vmatprep.mubr.f32.mxu0 0.0
    %1650 = vmatmul.mubr.f32.gmra.mrb[0].mxu0 %v1509
    %v1651 = vpop.f32.mrb[0].mxu0
    %v1652 = vadd.f32 %v1548, %v1651
    %v1653 = vpop.f32.mrb[0].mxu0
    %1654 = vmatprep.mubr.f32.mxu0 0.0
    %1655 = vmatmul.mubr.f32.gmra.mrb[0].mxu0 %v1510
    %v1656 = vpop.f32.mrb[0].mxu0
    %v1657 = vadd.f32 %v1553, %v1656
    %v1658 = vpop.f32.mrb[0].mxu0
    %1659 = vmatprep.mubr.f32.mxu0 0.0
    %1660 = vmatmul.mubr.f32.gmra.mrb[0].mxu0 %v1511
    %v1661 = vpop.f32.mrb[0].mxu0
    %v1662 = vadd.f32 %v1558, %v1661
    %v1663 = vpop.f32.mrb[0].mxu0
    %1664 = vdwg.mxu0
    %v1665 = vld [vmem:[%s6] sm:$0xff]
    %v1666 = vld [vmem:[%s6 + $0x8] sm:$0xff]
    %v1667 = vld [vmem:[%s6 + $0x10] sm:$0xff]
    %v1668 = vld [vmem:[%s6 + $0x18] sm:$0xff]
    %v1669 = vld [vmem:[%s6 + $0x20] sm:$0xff]
    %v1670 = vld [vmem:[%s6 + $0x28] sm:$0xff]
    %v1671 = vld [vmem:[%s6 + $0x30] sm:$0xff]
    %v1672 = vld [vmem:[%s6 + $0x38] sm:$0xff]
    %v1673 = vld [vmem:[%s6 + $0x40] sm:$0xff]
    %v1674 = vld [vmem:[%s6 + $0x48] sm:$0xff]
    %v1675 = vld [vmem:[%s6 + $0x50] sm:$0xff]
    %v1676 = vld [vmem:[%s6 + $0x58] sm:$0xff]
    %v1677 = vld [vmem:[%s6 + $0x60] sm:$0xff]
    %v1678 = vld [vmem:[%s6 + $0x68] sm:$0xff]
    %v1679 = vld [vmem:[%s6 + $0x70] sm:$0xff]
    %v1680 = vld [vmem:[%s6 + $0x78] sm:$0xff]
    %v1681 = vld [vmem:[%s7] sm:$0xff]
    %v1682 = vld [vmem:[%s7 + $0x8] sm:$0xff]
    %v1683 = vld [vmem:[%s7 + $0x10] sm:$0xff]
    %v1684 = vld [vmem:[%s7 + $0x18] sm:$0xff]
    %v1685 = vld [vmem:[%s7 + $0x20] sm:$0xff]
    %v1686 = vld [vmem:[%s7 + $0x28] sm:$0xff]
    %v1687 = vld [vmem:[%s7 + $0x30] sm:$0xff]
    %v1688 = vld [vmem:[%s7 + $0x38] sm:$0xff]
    %v1689 = vld [vmem:[%s7 + $0x40] sm:$0xff]
    %v1690 = vld [vmem:[%s7 + $0x48] sm:$0xff]
    %v1691 = vld [vmem:[%s7 + $0x50] sm:$0xff]
    %v1692 = vld [vmem:[%s7 + $0x58] sm:$0xff]
    %v1693 = vld [vmem:[%s7 + $0x60] sm:$0xff]
    %v1694 = vld [vmem:[%s7 + $0x68] sm:$0xff]
    %v1695 = vld [vmem:[%s7 + $0x70] sm:$0xff]
    %v1696 = vld [vmem:[%s7 + $0x78] sm:$0xff]
    %1698 = vset.pattern.permute.xlu0 0
    %1699 = vperm.xlu0 %1698, %v1681
    %v1700 = vpop.permute.xlu0 %1699
    %1703 = vset.pattern.permute.xlu0 0
    %1704 = vperm.xlu0 %1703, %v1682
    %v1705 = vpop.permute.xlu0 %1704
    %1708 = vset.pattern.permute.xlu0 0
    %1709 = vperm.xlu0 %1708, %v1683
    %v1710 = vpop.permute.xlu0 %1709
    %1713 = vset.pattern.permute.xlu0 0
    %1714 = vperm.xlu0 %1713, %v1684
    %v1715 = vpop.permute.xlu0 %1714
    %1718 = vset.pattern.permute.xlu0 0
    %1719 = vperm.xlu0 %1718, %v1685
    %v1720 = vpop.permute.xlu0 %1719
    %1723 = vset.pattern.permute.xlu0 0
    %1724 = vperm.xlu0 %1723, %v1686
    %v1725 = vpop.permute.xlu0 %1724
    %1728 = vset.pattern.permute.xlu0 0
    %1729 = vperm.xlu0 %1728, %v1687
    %v1730 = vpop.permute.xlu0 %1729
    %1733 = vset.pattern.permute.xlu0 0
    %1734 = vperm.xlu0 %1733, %v1688
    %v1735 = vpop.permute.xlu0 %1734
    %1738 = vset.pattern.permute.xlu0 0
    %1739 = vperm.xlu0 %1738, %v1689
    %v1740 = vpop.permute.xlu0 %1739
    %1743 = vset.pattern.permute.xlu0 0
    %1744 = vperm.xlu0 %1743, %v1690
    %v1745 = vpop.permute.xlu0 %1744
    %1748 = vset.pattern.permute.xlu0 0
    %1749 = vperm.xlu0 %1748, %v1691
    %v1750 = vpop.permute.xlu0 %1749
    %1753 = vset.pattern.permute.xlu0 0
    %1754 = vperm.xlu0 %1753, %v1692
    %v1755 = vpop.permute.xlu0 %1754
    %1758 = vset.pattern.permute.xlu0 0
    %1759 = vperm.xlu0 %1758, %v1693
    %v1760 = vpop.permute.xlu0 %1759
    %1763 = vset.pattern.permute.xlu0 0
    %1764 = vperm.xlu0 %1763, %v1694
    %v1765 = vpop.permute.xlu0 %1764
    %1768 = vset.pattern.permute.xlu0 0
    %1769 = vperm.xlu0 %1768, %v1695
    %v1770 = vpop.permute.xlu0 %1769
    %1773 = vset.pattern.permute.xlu0 0
    %1774 = vperm.xlu0 %1773, %v1696
    %v1775 = vpop.permute.xlu0 %1774
    %vm1777 = vcmask 523264
    %v1779 = vsel %vm1777, %v1665, 0
    %v1782 = vsel %vm1777, %v1666, 0
    %v1785 = vsel %vm1777, %v1667, 0
    %v1788 = vsel %vm1777, %v1668, 0
    %v1791 = vsel %vm1777, %v1669, 0
    %v1794 = vsel %vm1777, %v1670, 0
    %v1797 = vsel %vm1777, %v1671, 0
    %v1800 = vsel %vm1777, %v1672, 0
    %v1803 = vsel %vm1777, %v1673, 0
    %v1806 = vsel %vm1777, %v1674, 0
    %v1809 = vsel %vm1777, %v1675, 0
    %v1812 = vsel %vm1777, %v1676, 0
    %v1815 = vsel %vm1777, %v1677, 0
    %v1818 = vsel %vm1777, %v1678, 0
    %v1821 = vsel %vm1777, %v1679, 0
    %v1824 = vsel %vm1777, %v1680, 0
    %1826 = vmatprep.subr.mxu0 0.0
    %1827 = vmatpush1.msra.mxu0 %v1627
    %1828 = vmatprep.subr.mxu0 0.0
    %1829 = vmatpush1.msra.mxu0 %v1632
    %1830 = vmatprep.subr.mxu0 0.0
    %1831 = vmatpush1.msra.mxu0 %v1637
    %1832 = vmatprep.subr.mxu0 0.0
    %1833 = vmatpush1.msra.mxu0 %v1642
    %1834 = vmatprep.subr.mxu0 0.0
    %1835 = vmatpush1.msra.mxu0 %v1647
    %1836 = vmatprep.subr.mxu0 0.0
    %1837 = vmatpush1.msra.mxu0 %v1652
    %1838 = vmatprep.subr.mxu0 0.0
    %1839 = vmatpush1.msra.mxu0 %v1657
    %1840 = vmatprep.subr.mxu0 0.0
    %1841 = vmatpush1.msra.mxu0 %v1662
    %1842 = vmatprep.subr.mxu0 0.0
    %1843 = vmatpush1.msra.mxu0 0.0
    %1844 = vmatprep.subr.mxu0 0.0
    %1845 = vmatpush1.msra.mxu0 0.0
    %1846 = vmatprep.subr.mxu0 0.0
    %1847 = vmatpush1.msra.mxu0 0.0
    %1848 = vmatprep.subr.mxu0 0.0
    %1849 = vmatpush1.msra.mxu0 0.0
    %1850 = vmatprep.subr.mxu0 0.0
    %1851 = vmatpush1.msra.mxu0 0.0
    %1852 = vmatprep.subr.mxu0 0.0
    %1853 = vmatpush1.msra.mxu0 0.0
    %1854 = vmatprep.subr.mxu0 0.0
    %1855 = vmatpush1.msra.mxu0 0.0
    %1856 = vmatprep.subr.mxu0 0.0
    %1857 = vmatpush1.msra.mxu0 0.0
    %1858 = vmatprep.subr.mxu0 0.0
    %1859 = vmatpush1.msra.mxu0 0.0
    %1860 = vmatprep.subr.mxu0 0.0
    %1861 = vmatpush1.msra.mxu0 0.0
    %1862 = vmatprep.subr.mxu0 0.0
    %1863 = vmatpush1.msra.mxu0 0.0
    %1864 = vmatprep.subr.mxu0 0.0
    %1865 = vmatpush1.msra.mxu0 0.0
    %1866 = vmatprep.subr.mxu0 0.0
    %1867 = vmatpush1.msra.mxu0 0.0
    %1868 = vmatprep.subr.mxu0 0.0
    %1869 = vmatpush1.msra.mxu0 0.0
    %1870 = vmatprep.subr.mxu0 0.0
    %1871 = vmatpush1.msra.mxu0 0.0
    %1872 = vmatprep.subr.mxu0 0.0
    %1873 = vmatpush1.msra.mxu0 0.0
    %1874 = vmatprep.subr.mxu0 0.0
    %1875 = vmatpush1.msra.mxu0 0.0
    %1876 = vmatprep.subr.mxu0 0.0
    %1877 = vmatpush1.msra.mxu0 0.0
    %1878 = vmatprep.subr.mxu0 0.0
    %1879 = vmatpush1.msra.mxu0 0.0
    %1880 = vmatprep.subr.mxu0 0.0
    %1881 = vmatpush1.msra.mxu0 0.0
    %1882 = vmatprep.subr.mxu0 0.0
    %1883 = vmatpush1.msra.mxu0 0.0
    %1884 = vmatprep.subr.mxu0 0.0
    %1885 = vmatpush1.msra.mxu0 0.0
    %1886 = vmatprep.subr.mxu0 0.0
    %1887 = vmatpush1.msra.mxu0 0.0
    %1888 = vmatprep.subr.mxu0 0.0
    %1889 = vmatpush1.msra.mxu0 0.0
    %1890 = vmatprep.mubr.f32.mxu0 0.0
    %1891 = vmatmul.mubr.f32.gmra.mrb[0].mxu0 %v1779
    %v1892 = vpop.f32.mrb[0].mxu0
    %v1893 = vadd.f32 %v1700, %v1892
    %v1894 = vpop.f32.mrb[0].mxu0
    %1895 = vmatprep.mubr.f32.mxu0 0.0
    %1896 = vmatmul.mubr.f32.gmra.mrb[0].mxu0 %v1782
    %v1897 = vpop.f32.mrb[0].mxu0
    %v1898 = vadd.f32 %v1705, %v1897
    %v1899 = vpop.f32.mrb[0].mxu0
    %1900 = vmatprep.mubr.f32.mxu0 0.0
    %1901 = vmatmul.mubr.f32.gmra.mrb[0].mxu0 %v1785
    %v1902 = vpop.f32.mrb[0].mxu0
    %v1903 = vadd.f32 %v1710, %v1902
    %v1904 = vpop.f32.mrb[0].mxu0
    %1905 = vmatprep.mubr.f32.mxu0 0.0
    %1906 = vmatmul.mubr.f32.gmra.mrb[0].mxu0 %v1788
    %v1907 = vpop.f32.mrb[0].mxu0
    %v1908 = vadd.f32 %v1715, %v1907
    %v1909 = vpop.f32.mrb[0].mxu0
    %1910 = vmatprep.mubr.f32.mxu0 0.0
    %1911 = vmatmul.mubr.f32.gmra.mrb[0].mxu0 %v1791
    %v1912 = vpop.f32.mrb[0].mxu0
    %v1913 = vadd.f32 %v1720, %v1912
    %v1914 = vpop.f32.mrb[0].mxu0
    %1915 = vmatprep.mubr.f32.mxu0 0.0
    %1916 = vmatmul.mubr.f32.gmra.mrb[0].mxu0 %v1794
    %v1917 = vpop.f32.mrb[0].mxu0
    %v1918 = vadd.f32 %v1725, %v1917
    %v1919 = vpop.f32.mrb[0].mxu0
    %1920 = vmatprep.mubr.f32.mxu0 0.0
    %1921 = vmatmul.mubr.f32.gmra.mrb[0].mxu0 %v1797
    %v1922 = vpop.f32.mrb[0].mxu0
    %v1923 = vadd.f32 %v1730, %v1922
    %v1924 = vpop.f32.mrb[0].mxu0
    %1925 = vmatprep.mubr.f32.mxu0 0.0
    %1926 = vmatmul.mubr.f32.gmra.mrb[0].mxu0 %v1800
    %v1927 = vpop.f32.mrb[0].mxu0
    %v1928 = vadd.f32 %v1735, %v1927
    %v1929 = vpop.f32.mrb[0].mxu0
    %1930 = vmatprep.mubr.f32.mxu0 0.0
    %1931 = vmatmul.mubr.f32.gmra.mrb[0].mxu0 %v1803
    %v1932 = vpop.f32.mrb[0].mxu0
    %v1933 = vadd.f32 %v1740, %v1932
    %v1934 = vpop.f32.mrb[0].mxu0
    %1935 = vmatprep.mubr.f32.mxu0 0.0
    %1936 = vmatmul.mubr.f32.gmra.mrb[0].mxu0 %v1806
    %v1937 = vpop.f32.mrb[0].mxu0
    %v1938 = vadd.f32 %v1745, %v1937
    %v1939 = vpop.f32.mrb[0].mxu0
    %1940 = vmatprep.mubr.f32.mxu0 0.0
    %1941 = vmatmul.mubr.f32.gmra.mrb[0].mxu0 %v1809
    %v1942 = vpop.f32.mrb[0].mxu0
    %v1943 = vadd.f32 %v1750, %v1942
    %v1944 = vpop.f32.mrb[0].mxu0
    %1945 = vmatprep.mubr.f32.mxu0 0.0
    %1946 = vmatmul.mubr.f32.gmra.mrb[0].mxu0 %v1812
    %v1947 = vpop.f32.mrb[0].mxu0
    %v1948 = vadd.f32 %v1755, %v1947
    %v1949 = vpop.f32.mrb[0].mxu0
    %1950 = vmatprep.mubr.f32.mxu0 0.0
    %1951 = vmatmul.mubr.f32.gmra.mrb[0].mxu0 %v1815
    %v1952 = vpop.f32.mrb[0].mxu0
    %v1953 = vadd.f32 %v1760, %v1952
    %v1954 = vpop.f32.mrb[0].mxu0
    %1955 = vmatprep.mubr.f32.mxu0 0.0
    %1956 = vmatmul.mubr.f32.gmra.mrb[0].mxu0 %v1818
    %v1957 = vpop.f32.mrb[0].mxu0
    %v1958 = vadd.f32 %v1765, %v1957
    %v1959 = vpop.f32.mrb[0].mxu0
    %1960 = vmatprep.mubr.f32.mxu0 0.0
    %1961 = vmatmul.mubr.f32.gmra.mrb[0].mxu0 %v1821
    %v1962 = vpop.f32.mrb[0].mxu0
    %v1963 = vadd.f32 %v1770, %v1962
    %v1964 = vpop.f32.mrb[0].mxu0
    %1965 = vmatprep.mubr.f32.mxu0 0.0
    %1966 = vmatmul.mubr.f32.gmra.mrb[0].mxu0 %v1824
    %v1967 = vpop.f32.mrb[0].mxu0
    %v1968 = vadd.f32 %v1775, %v1967
    %v1969 = vpop.f32.mrb[0].mxu0
    %1970 = vdwg.mxu0
    %v1971 = vxor.u32 %v1893, 2147483648
    %v1972 = vxor.u32 %v1898, 2147483648
    %v1973 = vxor.u32 %v1903, 2147483648
    %v1974 = vxor.u32 %v1908, 2147483648
    %v1975 = vxor.u32 %v1913, 2147483648
    %v1976 = vxor.u32 %v1918, 2147483648
    %v1977 = vxor.u32 %v1923, 2147483648
    %v1978 = vxor.u32 %v1928, 2147483648
    %v1979 = vxor.u32 %v1933, 2147483648
    %v1980 = vxor.u32 %v1938, 2147483648
    %v1981 = vxor.u32 %v1943, 2147483648
    %v1982 = vxor.u32 %v1948, 2147483648
    %v1983 = vxor.u32 %v1953, 2147483648
    %v1984 = vxor.u32 %v1958, 2147483648
    %v1985 = vxor.u32 %v1963, 2147483648
    %v1986 = vxor.u32 %v1968, 2147483648
    %v1987 = vmul.f32 %v1971, 1.442695
    %v1988 = vpow.pop %v1987
    %v1989 = vmul.f32 %v1972, 1.442695
    %v1990 = vpow.pop %v1989
    %v1991 = vmul.f32 %v1973, 1.442695
    %v1992 = vpow.pop %v1991
    %v1993 = vmul.f32 %v1974, 1.442695
    %v1994 = vpow.pop %v1993
    %v1995 = vmul.f32 %v1975, 1.442695
    %v1996 = vpow.pop %v1995
    %v1997 = vmul.f32 %v1976, 1.442695
    %v1998 = vpow.pop %v1997
    %v1999 = vmul.f32 %v1977, 1.442695
    %v2000 = vpow.pop %v1999
    %v2001 = vmul.f32 %v1978, 1.442695
    %v2002 = vpow.pop %v2001
    %v2003 = vmul.f32 %v1979, 1.442695
    %v2004 = vpow.pop %v2003
    %v2005 = vmul.f32 %v1980, 1.442695
    %v2006 = vpow.pop %v2005
    %v2007 = vmul.f32 %v1981, 1.442695
    %v2008 = vpow.pop %v2007
    %v2009 = vmul.f32 %v1982, 1.442695
    %v2010 = vpow.pop %v2009
    %v2011 = vmul.f32 %v1983, 1.442695
    %v2012 = vpow.pop %v2011
    %v2013 = vmul.f32 %v1984, 1.442695
    %v2014 = vpow.pop %v2013
    %v2015 = vmul.f32 %v1985, 1.442695
    %v2016 = vpow.pop %v2015
    %v2017 = vmul.f32 %v1986, 1.442695
    %v2018 = vpow.pop %v2017
    %v2019 = vadd.f32 %v1988, 1.0
    %v2020 = vadd.f32 %v1990, 1.0
    %v2021 = vadd.f32 %v1992, 1.0
    %v2022 = vadd.f32 %v1994, 1.0
    %v2023 = vadd.f32 %v1996, 1.0
    %v2024 = vadd.f32 %v1998, 1.0
    %v2025 = vadd.f32 %v2000, 1.0
    %v2026 = vadd.f32 %v2002, 1.0
    %v2027 = vadd.f32 %v2004, 1.0
    %v2028 = vadd.f32 %v2006, 1.0
    %v2029 = vadd.f32 %v2008, 1.0
    %v2030 = vadd.f32 %v2010, 1.0
    %v2031 = vadd.f32 %v2012, 1.0
    %v2032 = vadd.f32 %v2014, 1.0
    %v2033 = vadd.f32 %v2016, 1.0
    %v2034 = vadd.f32 %v2018, 1.0
    %v2035 = vrcp.pop %v2019
    %v2036 = vmul.f32 1.0, %v2035
    %v2037 = vrcp.pop %v2020
    %v2038 = vmul.f32 1.0, %v2037
    %v2039 = vrcp.pop %v2021
    %v2040 = vmul.f32 1.0, %v2039
    %v2041 = vrcp.pop %v2022
    %v2042 = vmul.f32 1.0, %v2041
    %v2043 = vrcp.pop %v2023
    %v2044 = vmul.f32 1.0, %v2043
    %v2045 = vrcp.pop %v2024
    %v2046 = vmul.f32 1.0, %v2045
    %v2047 = vrcp.pop %v2025
    %v2048 = vmul.f32 1.0, %v2047
    %v2049 = vrcp.pop %v2026
    %v2050 = vmul.f32 1.0, %v2049
    %v2051 = vrcp.pop %v2027
    %v2052 = vmul.f32 1.0, %v2051
    %v2053 = vrcp.pop %v2028
    %v2054 = vmul.f32 1.0, %v2053
    %v2055 = vrcp.pop %v2029
    %v2056 = vmul.f32 1.0, %v2055
    %v2057 = vrcp.pop %v2030
    %v2058 = vmul.f32 1.0, %v2057
    %v2059 = vrcp.pop %v2031
    %v2060 = vmul.f32 1.0, %v2059
    %v2061 = vrcp.pop %v2032
    %v2062 = vmul.f32 1.0, %v2061
    %v2063 = vrcp.pop %v2033
    %v2064 = vmul.f32 1.0, %v2063
    %v2065 = vrcp.pop %v2034
    %v2066 = vmul.f32 1.0, %v2065
    %v2067 = vld [vmem:[%s8] sm:$0xff]
    %v2068 = vld [vmem:[%s8 + $0x8] sm:$0xff]
    %v2069 = vld [vmem:[%s8 + $0x10] sm:$0xff]
    %v2070 = vld [vmem:[%s8 + $0x18] sm:$0xff]
    %v2071 = vld [vmem:[%s8 + $0x20] sm:$0xff]
    %v2072 = vld [vmem:[%s8 + $0x28] sm:$0xff]
    %v2073 = vld [vmem:[%s8 + $0x30] sm:$0xff]
    %v2074 = vld [vmem:[%s8 + $0x38] sm:$0xff]
    %v2075 = vld [vmem:[%s8 + $0x40] sm:$0xff]
    %v2076 = vld [vmem:[%s8 + $0x48] sm:$0xff]
    %v2077 = vld [vmem:[%s8 + $0x50] sm:$0xff]
    %v2078 = vld [vmem:[%s8 + $0x58] sm:$0xff]
    %v2079 = vld [vmem:[%s8 + $0x60] sm:$0xff]
    %v2080 = vld [vmem:[%s8 + $0x68] sm:$0xff]
    %v2081 = vld [vmem:[%s8 + $0x70] sm:$0xff]
    %v2082 = vld [vmem:[%s8 + $0x78] sm:$0xff]
    %2084 = vset.pattern.permute.xlu0 0
    %2085 = vperm.xlu0 %2084, %v2067
    %v2086 = vpop.permute.xlu0 %2085
    %2089 = vset.pattern.permute.xlu0 0
    %2090 = vperm.xlu0 %2089, %v2068
    %v2091 = vpop.permute.xlu0 %2090
    %2094 = vset.pattern.permute.xlu0 0
    %2095 = vperm.xlu0 %2094, %v2069
    %v2096 = vpop.permute.xlu0 %2095
    %2099 = vset.pattern.permute.xlu0 0
    %2100 = vperm.xlu0 %2099, %v2070
    %v2101 = vpop.permute.xlu0 %2100
    %2104 = vset.pattern.permute.xlu0 0
    %2105 = vperm.xlu0 %2104, %v2071
    %v2106 = vpop.permute.xlu0 %2105
    %2109 = vset.pattern.permute.xlu0 0
    %2110 = vperm.xlu0 %2109, %v2072
    %v2111 = vpop.permute.xlu0 %2110
    %2114 = vset.pattern.permute.xlu0 0
    %2115 = vperm.xlu0 %2114, %v2073
    %v2116 = vpop.permute.xlu0 %2115
    %2119 = vset.pattern.permute.xlu0 0
    %2120 = vperm.xlu0 %2119, %v2074
    %v2121 = vpop.permute.xlu0 %2120
    %2124 = vset.pattern.permute.xlu0 0
    %2125 = vperm.xlu0 %2124, %v2075
    %v2126 = vpop.permute.xlu0 %2125
    %2129 = vset.pattern.permute.xlu0 0
    %2130 = vperm.xlu0 %2129, %v2076
    %v2131 = vpop.permute.xlu0 %2130
    %2134 = vset.pattern.permute.xlu0 0
    %2135 = vperm.xlu0 %2134, %v2077
    %v2136 = vpop.permute.xlu0 %2135
    %2139 = vset.pattern.permute.xlu0 0
    %2140 = vperm.xlu0 %2139, %v2078
    %v2141 = vpop.permute.xlu0 %2140
    %2144 = vset.pattern.permute.xlu0 0
    %2145 = vperm.xlu0 %2144, %v2079
    %v2146 = vpop.permute.xlu0 %2145
    %2149 = vset.pattern.permute.xlu0 0
    %2150 = vperm.xlu0 %2149, %v2080
    %v2151 = vpop.permute.xlu0 %2150
    %2154 = vset.pattern.permute.xlu0 0
    %2155 = vperm.xlu0 %2154, %v2081
    %v2156 = vpop.permute.xlu0 %2155
    %2159 = vset.pattern.permute.xlu0 0
    %2160 = vperm.xlu0 %2159, %v2082
    %v2161 = vpop.permute.xlu0 %2160
    %v2163 = vmul.f32 %v2036, %v2086
    %v2164 = vmul.f32 %v2038, %v2091
    %v2165 = vmul.f32 %v2040, %v2096
    %v2166 = vmul.f32 %v2042, %v2101
    %v2167 = vmul.f32 %v2044, %v2106
    %v2168 = vmul.f32 %v2046, %v2111
    %v2169 = vmul.f32 %v2048, %v2116
    %v2170 = vmul.f32 %v2050, %v2121
    %v2171 = vmul.f32 %v2052, %v2126
    %v2172 = vmul.f32 %v2054, %v2131
    %v2173 = vmul.f32 %v2056, %v2136
    %v2174 = vmul.f32 %v2058, %v2141
    %v2175 = vmul.f32 %v2060, %v2146
    %v2176 = vmul.f32 %v2062, %v2151
    %v2177 = vmul.f32 %v2064, %v2156
    %v2178 = vmul.f32 %v2066, %v2161
    %v2179 = vld [vmem:[%s9] sm:$0xff]
    %2180 = vmatprep.subr.mxu0 0.0
    %2181 = vmatpush1.msra.mxu0 %v2163
    %2182 = vmatprep.subr.mxu0 0.0
    %2183 = vmatpush1.msra.mxu0 %v2164
    %2184 = vmatprep.subr.mxu0 0.0
    %2185 = vmatpush1.msra.mxu0 %v2165
    %2186 = vmatprep.subr.mxu0 0.0
    %2187 = vmatpush1.msra.mxu0 %v2166
    %2188 = vmatprep.subr.mxu0 0.0
    %2189 = vmatpush1.msra.mxu0 %v2167
    %2190 = vmatprep.subr.mxu0 0.0
    %2191 = vmatpush1.msra.mxu0 %v2168
    %2192 = vmatprep.subr.mxu0 0.0
    %2193 = vmatpush1.msra.mxu0 %v2169
    %2194 = vmatprep.subr.mxu0 0.0
    %2195 = vmatpush1.msra.mxu0 %v2170
    %2196 = vmatprep.subr.mxu0 0.0
    %2197 = vmatpush1.msra.mxu0 %v2171
    %2198 = vmatprep.subr.mxu0 0.0
    %2199 = vmatpush1.msra.mxu0 %v2172
    %2200 = vmatprep.subr.mxu0 0.0
    %2201 = vmatpush1.msra.mxu0 %v2173
    %2202 = vmatprep.subr.mxu0 0.0
    %2203 = vmatpush1.msra.mxu0 %v2174
    %2204 = vmatprep.subr.mxu0 0.0
    %2205 = vmatpush1.msra.mxu0 %v2175
    %2206 = vmatprep.subr.mxu0 0.0
    %2207 = vmatpush1.msra.mxu0 %v2176
    %2208 = vmatprep.subr.mxu0 0.0
    %2209 = vmatpush1.msra.mxu0 %v2177
    %2210 = vmatprep.subr.mxu0 0.0
    %2211 = vmatpush1.msra.mxu0 %v2178
    %2212 = vmatprep.subr.mxu0 0.0
    %2213 = vmatpush1.msra.mxu0 0.0
    %2214 = vmatprep.subr.mxu0 0.0
    %2215 = vmatpush1.msra.mxu0 0.0
    %2216 = vmatprep.subr.mxu0 0.0
    %2217 = vmatpush1.msra.mxu0 0.0
    %2218 = vmatprep.subr.mxu0 0.0
    %2219 = vmatpush1.msra.mxu0 0.0
    %2220 = vmatprep.subr.mxu0 0.0
    %2221 = vmatpush1.msra.mxu0 0.0
    %2222 = vmatprep.subr.mxu0 0.0
    %2223 = vmatpush1.msra.mxu0 0.0
    %2224 = vmatprep.subr.mxu0 0.0
    %2225 = vmatpush1.msra.mxu0 0.0
    %2226 = vmatprep.subr.mxu0 0.0
    %2227 = vmatpush1.msra.mxu0 0.0
    %2228 = vmatprep.subr.mxu0 0.0
    %2229 = vmatpush1.msra.mxu0 0.0
    %2230 = vmatprep.subr.mxu0 0.0
    %2231 = vmatpush1.msra.mxu0 0.0
    %2232 = vmatprep.subr.mxu0 0.0
    %2233 = vmatpush1.msra.mxu0 0.0
    %2234 = vmatprep.subr.mxu0 0.0
    %2235 = vmatpush1.msra.mxu0 0.0
    %2236 = vmatprep.subr.mxu0 0.0
    %2237 = vmatpush1.msra.mxu0 0.0
    %2238 = vmatprep.subr.mxu0 0.0
    %2239 = vmatpush1.msra.mxu0 0.0
    %2240 = vmatprep.subr.mxu0 0.0
    %2241 = vmatpush1.msra.mxu0 0.0
    %2242 = vmatprep.subr.mxu0 0.0
    %2243 = vmatpush1.msra.mxu0 0.0
    %2244 = vmatprep.mubr.f32.mxu0 0.0
    %2245 = vmatmul.mubr.f32.gmra.mrb[0].mxu0 %v2179
    %v2246 = vpop.f32.mrb[0].mxu0
    %v2247 = vadd.f32 0.0, %v2246
    %v2248 = vpop.f32.mrb[0].mxu0
    %2249 = vdwg.mxu0
    %s2250 = sld [smem:[#allocation2 + $0x200]]
    %v2251 = vstv %s2250
    %v2252 = vadd.f32 %v2247, %v2251
    %v2253 = vlaneseq
    %v2254 = vshrl.u32 %v2253, 7
    %v2255 = vsub.s32 0, %v2254
    %v2256 = vrot.slane %v2247, %v2255
    %v2257 = vmul.f32 %v331, %v2256
    %v2258 = vlaneseq
    %v2259 = vshrl.u32 %v2258, 7
    %v2260 = vsub.s32 4, %v2259
    %v2261 = vrot.slane %v2252, %v2260
    %v2262 = vadd.f32 %v2261, %v2257
    %v2263 = vlaneseq
    %v2264 = vshrl.u32 %v2263, 7
    %v2265 = vsub.s32 1, %v2264
    %v2266 = vrot.slane %v2247, %v2265
    %v2267 = vmul.f32 %v516, %v2266
    %v2268 = vadd.f32 %v2262, %v2267
    %v2269 = vlaneseq
    %v2270 = vshrl.u32 %v2269, 7
    %v2271 = vsub.s32 2, %v2270
    %v2272 = vrot.slane %v2247, %v2271
    %v2273 = vmul.f32 %v700, %v2272
    %v2274 = vadd.f32 %v2268, %v2273
    %v2275 = vlaneseq
    %v2276 = vshrl.u32 %v2275, 7
    %v2277 = vsub.s32 3, %v2276
    %v2278 = vrot.slane %v2247, %v2277
    %v2279 = vmul.f32 %v884, %v2278
    %v2280 = vadd.f32 %v2274, %v2279
    %2281 = vst.msk [vmem:[%s10] sm:$0xff] %vm252, %v2280
    // Predicated region
    $region46: #{tpu_custom_call.1} parent=1 // pred_check
      _
    $region47: #{tpu_custom_call.1} parent=1 // pred_check_branch
      %2283 = sbr.rel (0) target = $region49
    $region48: #{tpu_custom_call.1} parent=1 // pred_region
      _
    $region49: #{tpu_custom_call.1} parent=1 // pred_fallthru
      _
    // Predicated region
    $region50: #{tpu_custom_call.1} parent=1 // pred_check
      _
    $region51: #{tpu_custom_call.1} parent=1 // pred_check_branch
      %2285 = sbr.rel (0) target = $region53
    $region52: #{tpu_custom_call.1} parent=1 // pred_region
      _
    $region53: #{tpu_custom_call.1} parent=1 // pred_fallthru
      _
    %2286 = vsyncpa [#allocation3], 1

</llo_original>
